<compile_context>
chip_gen: v6e
topology: v6e:2x2x1
jax: 0.10.0
libtpu: 0.0.40
codegen_flags: <defaults>
</compile_context>

<pallas_src>
import functools

import jax
import jax.numpy as jnp
from jax.experimental import pallas as pl
from jax.experimental.pallas import tpu as pltpu

K = 20                 # hard-coded k in get_graph_feature
LRELU_SLOPE = 0.2
BN_EPS = 1e-5


def _lrelu(x):
    # max(x, 0.2*x) == leaky_relu(x, 0.2); one vmul + one vmax on the VPU.
    return jnp.maximum(x, LRELU_SLOPE * x)


def _bf16(x):
    return x.astype(jnp.bfloat16)


def _tpu_vmem_capacity_bytes():
    try:
        return int(pltpu.get_tpu_info().vmem_capacity_bytes)
    except Exception:
        return 64 * 1024 * 1024          # conservative (v7x-sized) fallback


def _vmem_limit_bytes():
    return int(_tpu_vmem_capacity_bytes() * 0.9)


def _acc_dtype():
    # bf16 running-max accumulators on bf16-native VPUs (v6e/v7x); f32 on v5e
    # and older (no bf16 elementwise datapath).  round(max) == max(round), and
    # conv5 consumes bf16, so this is numerically identical either way.
    try:
        kind = jax.devices()[0].device_kind.lower()
    except Exception:
        kind = ""
    if ("v6" in kind) or ("v7" in kind) or ("7x" in kind):
        return jnp.bfloat16
    return jnp.float32


# --------------------------------------------------------------------------
# Kernel 1: fused pairwise negative squared distance + greedy top-K selection.
#   d[j, q] = -||p_j - p_q||^2 = 2 <p_j, p_q> - |p_j|^2 - |p_q|^2
# Queries live on the lane axis so the per-iteration max / argmin reductions
# run over sublanes and the (K, tile_n) index block is written lane-dense.
# Kept in f32 (bf16 would worsen the cancellation and could reorder knn).
# --------------------------------------------------------------------------
def _knn_kernel(pts_ref, ptsT_ref, sqc_ref, sqr_ref, idx_ref, *, k):
    g = jnp.dot(pts_ref[0], ptsT_ref[0], preferred_element_type=jnp.float32)
    d = 2.0 * g - sqc_ref[0] - sqr_ref[0]                 # (N, tile_n) f32
    n_all = d.shape[0]
    row = jax.lax.broadcasted_iota(jnp.int32, d.shape, 0)
    cols = []
    vals = d
    for _ in range(k):
        m = jnp.max(vals, axis=0, keepdims=True)          # (1, tile_n)
        sel = jnp.where(vals >= m, row, n_all)            # ties -> smallest index
        j = jnp.min(sel, axis=0, keepdims=True)           # (1, tile_n) int32
        cols.append(j)
        vals = jnp.where(row == j, -jnp.inf, vals)        # knock out the winner
    idx_ref[0] = jnp.concatenate(cols, axis=0)            # (k, tile_n)


def _choose_tile_n(n):
    if n <= 256:
        return n
    for t in (512, 256, 128):
        if n % t == 0:
            return t
    return n


def knn_indices(pts, k=K, tile_n=None):
    """Fused pairwise distances + top-k.  Returns neighbor indices (B, k, N)."""
    B, N, _ = pts.shape
    assert N >= k
    if tile_n is None:
        tile_n = _choose_tile_n(N)
    assert N % tile_n == 0
    ptsT = jnp.transpose(pts, (0, 2, 1))                  # (B, 3, N) lane-dense
    sq = jnp.sum(pts * pts, axis=-1)                      # (B, N)
    sq_col = sq[:, :, None]                               # (B, N, 1)
    sq_row = sq[:, None, :]                               # (B, 1, N)
    return pl.pallas_call(
        functools.partial(_knn_kernel, k=k),
        out_shape=jax.ShapeDtypeStruct((B, k, N), jnp.int32),
        grid=(B, N // tile_n),
        in_specs=[pl.BlockSpec((1, N, 3), lambda b, r: (b, 0, 0)),
                  pl.BlockSpec((1, 3, tile_n), lambda b, r: (b, 0, r)),
                  pl.BlockSpec((1, N, 1), lambda b, r: (b, 0, 0)),
                  pl.BlockSpec((1, 1, tile_n), lambda b, r: (b, 0, r))],
        out_specs=pl.BlockSpec((1, k, tile_n), lambda b, r: (b, 0, r)),
        compiler_params=pltpu.CompilerParams(
            dimension_semantics=("parallel", "parallel"),
            vmem_limit_bytes=_vmem_limit_bytes()),
    )(pts, ptsT, sq_col, sq_row)


# --------------------------------------------------------------------------
# Kernel 2 (fused encoder): conv1..conv4 on a k-chunk of neighbor-xyz rows with
# per-edge-block interleaved running max over k; then (last k step) conv5 as
# split partial matmuls + global max/mean pooling over N + the full MLP head.
# --------------------------------------------------------------------------
def _encoder_kernel(nbr_ref, ctr_ref,
                    w1a, w1b, b1, w2, b2, w3, b3, w4, b4,
                    w5a, w5b, w5c, w5d, b5,
                    hw1a, hw1b, hc1, hw2, hc2, hw3, hb3,
                    out_ref,
                    h1base, x1_acc, x2_acc, x3_acc, x4_acc,
                    *, n_pts, tile_k):
    kk = pl.program_id(1)

    @pl.when(kk == 0)
    def _():
        # k-invariant conv1 contribution (center xyz + extra feats) + BN shift.
        h1base[...] = (jnp.dot(ctr_ref[0], w1b[...],
                               preferred_element_type=jnp.float32) + b1[...])
        x1_acc[...] = jnp.full(x1_acc.shape, -jnp.inf, x1_acc.dtype)
        x2_acc[...] = jnp.full(x2_acc.shape, -jnp.inf, x2_acc.dtype)
        x3_acc[...] = jnp.full(x3_acc.shape, -jnp.inf, x3_acc.dtype)
        x4_acc[...] = jnp.full(x4_acc.shape, -jnp.inf, x4_acc.dtype)

    base = h1base[...]                                     # (n_pts, 64) f32
    acc_dt = x1_acc.dtype
    # Per-edge-block processing: live set bounded to ~one layer's activations,
    # and the k-invariant base add needs no tiling/concat.
    for j in range(tile_k):
        nb = nbr_ref[0, j * n_pts:(j + 1) * n_pts, :]      # (n_pts, 3) bf16
        h1 = _lrelu(jnp.dot(nb, w1a[...],
                            preferred_element_type=jnp.float32) + base)
        x1_acc[...] = jnp.maximum(x1_acc[...], h1.astype(acc_dt))
        h2 = _lrelu(jnp.dot(_bf16(h1), w2[...],
                            preferred_element_type=jnp.float32) + b2[...])
        x2_acc[...] = jnp.maximum(x2_acc[...], h2.astype(acc_dt))
        h3 = _lrelu(jnp.dot(_bf16(h2), w3[...],
                            preferred_element_type=jnp.float32) + b3[...])
        x3_acc[...] = jnp.maximum(x3_acc[...], h3.astype(acc_dt))
        h4 = _lrelu(jnp.dot(_bf16(h3), w4[...],
                            preferred_element_type=jnp.float32) + b4[...])
        x4_acc[...] = jnp.maximum(x4_acc[...], h4.astype(acc_dt))

    @pl.when(kk == pl.num_programs(1) - 1)
    def _():
        # conv5 without the xcat concatenate: split-w5 partial matmuls, f32 acc.
        y = (jnp.dot(_bf16(x1_acc[...]), w5a[...], preferred_element_type=jnp.float32)
             + jnp.dot(_bf16(x2_acc[...]), w5b[...], preferred_element_type=jnp.float32)
             + jnp.dot(_bf16(x3_acc[...]), w5c[...], preferred_element_type=jnp.float32)
             + jnp.dot(_bf16(x4_acc[...]), w5d[...], preferred_element_type=jnp.float32)
             + b5[...])
        y = _lrelu(y)                                      # (n_pts, E)
        y_max = jnp.max(y, axis=0, keepdims=True)          # (1, E)
        y_mean = jnp.sum(y, axis=0, keepdims=True) * (1.0 / n_pts)
        # Fused MLP head; linear1 split over the [max | mean] halves (no concat).
        h = _lrelu(jnp.dot(_bf16(y_max), hw1a[...], preferred_element_type=jnp.float32)
                   + jnp.dot(_bf16(y_mean), hw1b[...], preferred_element_type=jnp.float32)
                   + hc1[...])
        h = _lrelu(jnp.dot(_bf16(h), hw2[...], preferred_element_type=jnp.float32)
                   + hc2[...])
        out_ref[...] = (jnp.dot(_bf16(h), hw3[...], preferred_element_type=jnp.float32)
                        + hb3[...])


def _choose_tile_k(n_pts, weights_bytes, acc_bytes):
    budget = int(_tpu_vmem_capacity_bytes() * 0.7)         # leave compiler headroom
    lanes = 128                                            # narrow blocks lane-pad to 128
    persistent = (n_pts * 512 * acc_bytes                  # x1..x4 accumulators
                  + n_pts * lanes * 4                      # h1base scratch
                  + 2 * n_pts * lanes * 2                  # ctr/feat block (double-buffered)
                  + weights_bytes)                         # resident weights
    live_compute = n_pts * 512 * 6                         # per-block activations (f32+bf16)
    for tk in (20, 10, 5, 4, 2, 1):
        if K % tk:
            continue
        stream = 2 * tk * n_pts * lanes * 2                # double-buffered bf16 nbr chunk
        if persistent + live_compute + stream <= budget:
            return tk
    return 1


def encoder_fused(nbr, ctrfeat, conv_params, head_params, tile_k=None):
    B, KN, _ = nbr.shape
    n_pts, cf = ctrfeat.shape[1], ctrfeat.shape[2]
    assert KN == K * n_pts
    assert n_pts % 8 == 0, "n_pts must be a multiple of 8 (sublane tiling)"
    # TODO(synk): pad n_pts to a multiple of 16 for fully packed bf16 sublanes.

    wnames = ["w1a", "w1b", "b1", "w2", "b2", "w3", "b3", "w4", "b4",
              "w5a", "w5b", "w5c", "w5d", "b5"]
    hnames = ["w1a", "w1b", "c1", "w2", "c2", "w3", "b3"]
    weights = [conv_params[n] for n in wnames] + [head_params[n] for n in hnames]
    weights_bytes = 2 * sum(int(w.size) * w.dtype.itemsize for w in weights)

    acc_dtype = _acc_dtype()
    if tile_k is None:
        tile_k = _choose_tile_k(n_pts, weights_bytes, jnp.dtype(acc_dtype).itemsize)
    assert K % tile_k == 0
    k_steps = K // tile_k
    out_c = head_params["b3"].shape[-1]

    def build_in_specs(single_buffer_weights):
        specs = [pl.BlockSpec((1, tile_k * n_pts, 3), lambda b, kk: (b, kk, 0)),
                 pl.BlockSpec((1, n_pts, cf), lambda b, kk: (b, 0, 0))]
        for w in weights:
            if single_buffer_weights:
                specs.append(pl.BlockSpec(w.shape, lambda b, kk: (0, 0),
                                          pipeline_mode=pl.Buffered(buffer_count=1)))
            else:
                specs.append(pl.BlockSpec(w.shape, lambda b, kk: (0, 0)))
        return specs

    scratch_shapes = [pltpu.VMEM((n_pts, 64), jnp.float32),   # h1base
                      pltpu.VMEM((n_pts, 64), acc_dtype),
                      pltpu.VMEM((n_pts, 64), acc_dtype),
                      pltpu.VMEM((n_pts, 128), acc_dtype),
                      pltpu.VMEM((n_pts, 256), acc_dtype)]

    def run(single_buffer_weights):
        return pl.pallas_call(
            functools.partial(_encoder_kernel, n_pts=n_pts, tile_k=tile_k),
            out_shape=jax.ShapeDtypeStruct((B, out_c), jnp.float32),
            grid=(B, k_steps),
            in_specs=build_in_specs(single_buffer_weights),
            out_specs=pl.BlockSpec((1, out_c), lambda b, kk: (b, 0)),
            scratch_shapes=scratch_shapes,
            compiler_params=pltpu.CompilerParams(
                dimension_semantics=("parallel", "arbitrary"),
                vmem_limit_bytes=_vmem_limit_bytes()),
        )(nbr, ctrfeat, *weights)

    try:
        # Weights have constant index_maps: single-buffer them so the resident
        # bf16 weight set is not doubled by the pipeline.
        return run(single_buffer_weights=True)
    except Exception:
        # Fallback for Pallas versions without BlockSpec(pipeline_mode=...).
        return run(single_buffer_weights=False)


# --------------------------------------------------------------------------
# Plain-JAX glue: neighbor gather only.  The center-xyz + extra-feature block
# is passed k-invariant (never duplicated over k in HBM).
# --------------------------------------------------------------------------
def build_graph_feature(x, idx):
    # x: (B, N, 3+fd); idx: (B, K, N) neighbor indices (edge-major).
    B, N, _ = x.shape
    pts = x[:, :, :3]
    nbr = jax.vmap(lambda p, i: p[i])(pts, idx)            # (B, K, N, 3)
    nbr = nbr.reshape(B, K * N, 3).astype(jnp.bfloat16)    # edge-major rows
    ctrfeat = x.astype(jnp.bfloat16)                       # (B, N, 3+fd)
    # TODO(synk): the gather stays in XLA; a Pallas per-row DMA gather (scalar-
    # prefetched indices) fused with conv1 would remove this HBM pass.
    return nbr, ctrfeat


def cvae_encoder_forward(x, conv_params, head_params, tile_k=None, tile_n=None):
    # x: (B, N, 3+feat_dim)  (the PyTorch module receives (B, N, D) and permutes)
    pts = x[:, :, :3]
    idx = knn_indices(pts, tile_n=tile_n)                  # kernel 1 (dist + top-k fused)
    nbr, ctrfeat = build_graph_feature(x, idx)
    return encoder_fused(nbr, ctrfeat, conv_params, head_params, tile_k=tile_k)


# --------------------------------------------------------------------------
# Deterministic parameter init (shapes from CvaeEncoder.__init__), BN folded,
# matmul weights pre-cast to bf16 (biases/shifts stay f32), conv1/conv5/linear1
# split so the kernels never concatenate.
# --------------------------------------------------------------------------
def _bn_fold(c, k1, k2, k3, k4):
    gamma = jax.random.uniform(k1, (c,), minval=0.5, maxval=1.5)
    beta = 0.1 * jax.random.normal(k2, (c,))
    rmean = 0.1 * jax.random.normal(k3, (c,))
    rvar = jax.random.uniform(k4, (c,), minval=0.5, maxval=1.5)
    scale = gamma / jnp.sqrt(rvar + BN_EPS)
    shift = beta - rmean * scale
    return scale.astype(jnp.float32), shift.astype(jnp.float32)


def init_params(key, feat_dim, emb_dims, output_channels):
    cin = 6 + feat_dim
    conv_dims = [(cin, 64), (64, 64), (64, 128), (128, 256), (512, emb_dims)]
    keys = iter(jax.random.split(key, 64))

    conv_params = {}
    for i, (ci, co) in enumerate(conv_dims, start=1):
        w = (jax.random.normal(next(keys), (ci, co)) / jnp.sqrt(ci)).astype(jnp.float32)
        s, sh = _bn_fold(co, next(keys), next(keys), next(keys), next(keys))
        w = w * s                                   # BN scale folded into conv weight
        if i == 1:
            conv_params["w1a"] = w[:3].astype(jnp.bfloat16)    # neighbor-xyz rows
            conv_params["w1b"] = w[3:].astype(jnp.bfloat16)    # center-xyz + feat rows
            conv_params["b1"] = sh[None, :]
        elif i < 5:
            conv_params[f"w{i}"] = w.astype(jnp.bfloat16)
            conv_params[f"b{i}"] = sh[None, :]
        else:
            conv_params["w5a"] = w[:64].astype(jnp.bfloat16)
            conv_params["w5b"] = w[64:128].astype(jnp.bfloat16)
            conv_params["w5c"] = w[128:256].astype(jnp.bfloat16)
            conv_params["w5d"] = w[256:512].astype(jnp.bfloat16)
            conv_params["b5"] = sh[None, :]

    # head: linear1(2E->512, no bias)+bn6, linear2(512->256)+bn7, linear3(256->out)
    w6 = (jax.random.normal(next(keys), (2 * emb_dims, 512))
          / jnp.sqrt(2 * emb_dims)).astype(jnp.float32)
    s6, sh6 = _bn_fold(512, next(keys), next(keys), next(keys), next(keys))
    w7 = (jax.random.normal(next(keys), (512, 256)) / jnp.sqrt(512)).astype(jnp.float32)
    b7 = (0.1 * jax.random.normal(next(keys), (256,))).astype(jnp.float32)
    s7, sh7 = _bn_fold(256, next(keys), next(keys), next(keys), next(keys))
    w8 = (jax.random.normal(next(keys), (256, output_channels))
          / jnp.sqrt(256)).astype(jnp.float32)
    b8 = (0.1 * jax.random.normal(next(keys), (output_channels,))).astype(jnp.float32)

    w6f = w6 * s6
    head_params = {
        "w1a": w6f[:emb_dims].astype(jnp.bfloat16),      # acts on max-pool half
        "w1b": w6f[emb_dims:].astype(jnp.bfloat16),      # acts on mean-pool half
        "c1": sh6[None, :],
        "w2": (w7 * s7).astype(jnp.bfloat16),
        "c2": (b7 * s7 + sh7)[None, :],
        "w3": w8.astype(jnp.bfloat16),
        "b3": b8[None, :],
    }
    return conv_params, head_params


# --------------------------------------------------------------------------
# Pure-JAX f32 reference (same bf16-rounded weights & graph features).
# --------------------------------------------------------------------------
def reference_forward(nbr, ctrfeat, conv_params, head_params, n_pts):
    f32 = lambda a: a.astype(jnp.float32)
    B = nbr.shape[0]
    nb = f32(nbr).reshape(B, K, n_pts, 3)
    cf = f32(ctrfeat)[:, None, :, :]                        # (B, 1, N, Cf)
    h = _lrelu(nb @ f32(conv_params["w1a"]) + cf @ f32(conv_params["w1b"])
               + conv_params["b1"])
    pooled_feats = [jnp.max(h, axis=1)]                     # max over k -> (B, N, C)
    for i in range(2, 5):
        h = _lrelu(h @ f32(conv_params[f"w{i}"]) + conv_params[f"b{i}"])
        pooled_feats.append(jnp.max(h, axis=1))
    xc = jnp.concatenate(pooled_feats, axis=-1)             # (B, N, 512)
    w5 = jnp.concatenate([f32(conv_params["w5a"]), f32(conv_params["w5b"]),
                          f32(conv_params["w5c"]), f32(conv_params["w5d"])], axis=0)
    y = _lrelu(xc @ w5 + conv_params["b5"])                 # (B, N, E)
    pooled = jnp.concatenate([jnp.max(y, axis=1), jnp.mean(y, axis=1)], axis=-1)
    w1 = jnp.concatenate([f32(head_params["w1a"]), f32(head_params["w1b"])], axis=0)
    h = _lrelu(pooled @ w1 + head_params["c1"])
    h = _lrelu(h @ f32(head_params["w2"]) + head_params["c2"])
    return h @ f32(head_params["w3"]) + head_params["b3"]


if __name__ == "__main__":
    B, N = 2, 64
    feat_dim = 2
    emb_dims = 64
    output_channels = 16

    key = jax.random.PRNGKey(0)
    kx, kp = jax.random.split(key)
    x = jax.random.normal(kx, (B, N, 3 + feat_dim), dtype=jnp.float32)
    conv_params, head_params = init_params(kp, feat_dim, emb_dims, output_channels)

    # tile_k=5 exercises the k-reduction grid axis / accumulator path even at
    # this small N (the auto heuristic would pick the full K here).
    out = cvae_encoder_forward(x, conv_params, head_params, tile_k=5)
    out = jax.block_until_ready(out)
    assert out.shape == (B, output_channels), out.shape

    # Kernel-1 check: selected-neighbor distances match lax.top_k's values
    # (compare values, not indices, so tie ordering cannot flake the test).
    pts = x[:, :, :3]
    idx = knn_indices(pts)                                  # (B, K, N)
    sq = jnp.sum(pts * pts, axis=-1)
    negd = (2.0 * jnp.einsum("bnd,bmd->bnm", pts, pts)
            - sq[:, :, None] - sq[:, None, :])
    ref_vals = jax.lax.top_k(negd, K)[0]                    # (B, N, K)
    got_vals = jnp.take_along_axis(negd, jnp.transpose(idx, (0, 2, 1)), axis=-1)
    assert jnp.allclose(got_vals, ref_vals, atol=1e-3, rtol=1e-3)

    # End-to-end check vs the f32 JAX reference on identical graph features.
    nbr, ctrfeat = build_graph_feature(x, idx)
    ref = reference_forward(nbr, ctrfeat, conv_params, head_params, N)
    assert jnp.allclose(out, ref, atol=3e-2, rtol=3e-2), \
        float(jnp.max(jnp.abs(out - ref)))

    # Also run the auto-tiled (VMEM-capacity-derived tile_k) path.
    out_full = jax.block_until_ready(
        cvae_encoder_forward(x, conv_params, head_params))
    assert jnp.allclose(out_full, ref, atol=3e-2, rtol=3e-2)

    print("KERNEL_OK")
</pallas_src>

<mosaic_0001>
module attributes {stable_mosaic.version = 11 : i64} {
  func.func @_knn_kernel(%arg0: i32, %arg1: i32, %arg2: memref<1x64x3xf32, #tpu.memory_space<vmem>>, %arg3: memref<1x3x64xf32, #tpu.memory_space<vmem>>, %arg4: memref<1x64x1xf32, #tpu.memory_space<vmem>>, %arg5: memref<1x1x64xf32, #tpu.memory_space<vmem>>, %arg6: memref<1x20x64xi32, #tpu.memory_space<vmem>>) attributes {dimension_semantics = [#tpu.dimension_semantics<parallel>, #tpu.dimension_semantics<parallel>], iteration_bounds = array<i64: 2, 1>, scalar_prefetch = 0 : i64, scratch_operands = 0 : i64, tpu.core_type = #tpu.core_type<tc>, window_params = [{transform_indices = @transform_0, window_bounds = array<i64: 1, 64, 3>}, {transform_indices = @transform_1, window_bounds = array<i64: 1, 3, 64>}, {transform_indices = @transform_2, window_bounds = array<i64: 1, 64, 1>}, {transform_indices = @transform_3, window_bounds = array<i64: 1, 1, 64>}, {transform_indices = @transform_4, window_bounds = array<i64: 1, 20, 64>}]} {
    %c0 = arith.constant 0 : index
    %c0_0 = arith.constant 0 : index
    %c0_1 = arith.constant 0 : index
    %0 = vector.load %arg2[%c0, %c0_0, %c0_1] : memref<1x64x3xf32, #tpu.memory_space<vmem>>, vector<1x64x3xf32>
    %1 = vector.shape_cast %0 : vector<1x64x3xf32> to vector<64x3xf32>
    %c0_2 = arith.constant 0 : index
    %c0_3 = arith.constant 0 : index
    %c0_4 = arith.constant 0 : index
    %2 = vector.load %arg3[%c0_2, %c0_3, %c0_4] : memref<1x3x64xf32, #tpu.memory_space<vmem>>, vector<1x3x64xf32>
    %3 = vector.shape_cast %2 : vector<1x3x64xf32> to vector<3x64xf32>
    %cst = arith.constant dense<0.000000e+00> : vector<64x64xf32>
    %4 = tpu.matmul %1, %3, %cst {dimension_numbers = #tpu.dot_dimension_numbers<[1], [0], [0], [1], [0, 0, 1, 1], [], []>} : vector<64x3xf32>, vector<3x64xf32>, vector<64x64xf32> -> vector<64x64xf32>
    %cst_5 = arith.constant 2.000000e+00 : f32
    %5 = vector.broadcast %cst_5 : f32 to vector<64x64xf32>
    %6 = arith.mulf %5, %4 : vector<64x64xf32>
    %c0_6 = arith.constant 0 : index
    %c0_7 = arith.constant 0 : index
    %c0_8 = arith.constant 0 : index
    %7 = vector.load %arg4[%c0_6, %c0_7, %c0_8] : memref<1x64x1xf32, #tpu.memory_space<vmem>>, vector<1x64x1xf32>
    %8 = vector.shape_cast %7 : vector<1x64x1xf32> to vector<64x1xf32>
    %9 = vector.broadcast %8 : vector<64x1xf32> to vector<64x64xf32>
    %10 = arith.subf %6, %9 : vector<64x64xf32>
    %c0_9 = arith.constant 0 : index
    %c0_10 = arith.constant 0 : index
    %c0_11 = arith.constant 0 : index
    %11 = vector.load %arg5[%c0_9, %c0_10, %c0_11] : memref<1x1x64xf32, #tpu.memory_space<vmem>>, vector<1x1x64xf32>
    %12 = vector.shape_cast %11 : vector<1x1x64xf32> to vector<1x64xf32>
    %13 = vector.broadcast %12 : vector<1x64xf32> to vector<64x64xf32>
    %14 = arith.subf %10, %13 : vector<64x64xf32>
    %15 = tpu.iota {dimensions = array<i32: 0>} : vector<64x64xi32>
    %cst_12 = arith.constant dense<0xFF800000> : vector<64xf32>
    %16 = vector.multi_reduction <maximumf>, %14, %cst_12 [0] : vector<64x64xf32> to vector<64xf32>
    %17 = vector.shape_cast %16 : vector<64xf32> to vector<1x64xf32>
    %18 = vector.broadcast %17 : vector<1x64xf32> to vector<64x64xf32>
    %19 = arith.cmpf oge, %14, %18 : vector<64x64xf32>
    %c64_i32 = arith.constant 64 : i32
    %20 = vector.broadcast %c64_i32 : i32 to vector<64x64xi32>
    %21 = arith.select %19, %15, %20 : vector<64x64xi1>, vector<64x64xi32>
    %cst_13 = arith.constant dense<2147483647> : vector<64xi32>
    %22 = vector.multi_reduction <minsi>, %21, %cst_13 [0] : vector<64x64xi32> to vector<64xi32>
    %23 = vector.shape_cast %22 : vector<64xi32> to vector<1x64xi32>
    %24 = vector.broadcast %23 : vector<1x64xi32> to vector<64x64xi32>
    %25 = arith.cmpi eq, %15, %24 : vector<64x64xi32>
    %cst_14 = arith.constant 0xFF800000 : f32
    %26 = vector.broadcast %cst_14 : f32 to vector<64x64xf32>
    %27 = arith.select %25, %26, %14 : vector<64x64xi1>, vector<64x64xf32>
    %cst_15 = arith.constant dense<0xFF800000> : vector<64xf32>
    %28 = vector.multi_reduction <maximumf>, %27, %cst_15 [0] : vector<64x64xf32> to vector<64xf32>
    %29 = vector.shape_cast %28 : vector<64xf32> to vector<1x64xf32>
    %30 = vector.broadcast %29 : vector<1x64xf32> to vector<64x64xf32>
    %31 = arith.cmpf oge, %27, %30 : vector<64x64xf32>
    %c64_i32_16 = arith.constant 64 : i32
    %32 = vector.broadcast %c64_i32_16 : i32 to vector<64x64xi32>
    %33 = arith.select %31, %15, %32 : vector<64x64xi1>, vector<64x64xi32>
    %cst_17 = arith.constant dense<2147483647> : vector<64xi32>
    %34 = vector.multi_reduction <minsi>, %33, %cst_17 [0] : vector<64x64xi32> to vector<64xi32>
    %35 = vector.shape_cast %34 : vector<64xi32> to vector<1x64xi32>
    %36 = vector.broadcast %35 : vector<1x64xi32> to vector<64x64xi32>
    %37 = arith.cmpi eq, %15, %36 : vector<64x64xi32>
    %cst_18 = arith.constant 0xFF800000 : f32
    %38 = vector.broadcast %cst_18 : f32 to vector<64x64xf32>
    %39 = arith.select %37, %38, %27 : vector<64x64xi1>, vector<64x64xf32>
    %cst_19 = arith.constant dense<0xFF800000> : vector<64xf32>
    %40 = vector.multi_reduction <maximumf>, %39, %cst_19 [0] : vector<64x64xf32> to vector<64xf32>
    %41 = vector.shape_cast %40 : vector<64xf32> to vector<1x64xf32>
    %42 = vector.broadcast %41 : vector<1x64xf32> to vector<64x64xf32>
    %43 = arith.cmpf oge, %39, %42 : vector<64x64xf32>
    %c64_i32_20 = arith.constant 64 : i32
    %44 = vector.broadcast %c64_i32_20 : i32 to vector<64x64xi32>
    %45 = arith.select %43, %15, %44 : vector<64x64xi1>, vector<64x64xi32>
    %cst_21 = arith.constant dense<2147483647> : vector<64xi32>
    %46 = vector.multi_reduction <minsi>, %45, %cst_21 [0] : vector<64x64xi32> to vector<64xi32>
    %47 = vector.shape_cast %46 : vector<64xi32> to vector<1x64xi32>
    %48 = vector.broadcast %47 : vector<1x64xi32> to vector<64x64xi32>
    %49 = arith.cmpi eq, %15, %48 : vector<64x64xi32>
    %cst_22 = arith.constant 0xFF800000 : f32
    %50 = vector.broadcast %cst_22 : f32 to vector<64x64xf32>
    %51 = arith.select %49, %50, %39 : vector<64x64xi1>, vector<64x64xf32>
    %cst_23 = arith.constant dense<0xFF800000> : vector<64xf32>
    %52 = vector.multi_reduction <maximumf>, %51, %cst_23 [0] : vector<64x64xf32> to vector<64xf32>
    %53 = vector.shape_cast %52 : vector<64xf32> to vector<1x64xf32>
    %54 = vector.broadcast %53 : vector<1x64xf32> to vector<64x64xf32>
    %55 = arith.cmpf oge, %51, %54 : vector<64x64xf32>
    %c64_i32_24 = arith.constant 64 : i32
    %56 = vector.broadcast %c64_i32_24 : i32 to vector<64x64xi32>
    %57 = arith.select %55, %15, %56 : vector<64x64xi1>, vector<64x64xi32>
    %cst_25 = arith.constant dense<2147483647> : vector<64xi32>
    %58 = vector.multi_reduction <minsi>, %57, %cst_25 [0] : vector<64x64xi32> to vector<64xi32>
    %59 = vector.shape_cast %58 : vector<64xi32> to vector<1x64xi32>
    %60 = vector.broadcast %59 : vector<1x64xi32> to vector<64x64xi32>
    %61 = arith.cmpi eq, %15, %60 : vector<64x64xi32>
    %cst_26 = arith.constant 0xFF800000 : f32
    %62 = vector.broadcast %cst_26 : f32 to vector<64x64xf32>
    %63 = arith.select %61, %62, %51 : vector<64x64xi1>, vector<64x64xf32>
    %cst_27 = arith.constant dense<0xFF800000> : vector<64xf32>
    %64 = vector.multi_reduction <maximumf>, %63, %cst_27 [0] : vector<64x64xf32> to vector<64xf32>
    %65 = vector.shape_cast %64 : vector<64xf32> to vector<1x64xf32>
    %66 = vector.broadcast %65 : vector<1x64xf32> to vector<64x64xf32>
    %67 = arith.cmpf oge, %63, %66 : vector<64x64xf32>
    %c64_i32_28 = arith.constant 64 : i32
    %68 = vector.broadcast %c64_i32_28 : i32 to vector<64x64xi32>
    %69 = arith.select %67, %15, %68 : vector<64x64xi1>, vector<64x64xi32>
    %cst_29 = arith.constant dense<2147483647> : vector<64xi32>
    %70 = vector.multi_reduction <minsi>, %69, %cst_29 [0] : vector<64x64xi32> to vector<64xi32>
    %71 = vector.shape_cast %70 : vector<64xi32> to vector<1x64xi32>
    %72 = vector.broadcast %71 : vector<1x64xi32> to vector<64x64xi32>
    %73 = arith.cmpi eq, %15, %72 : vector<64x64xi32>
    %cst_30 = arith.constant 0xFF800000 : f32
    %74 = vector.broadcast %cst_30 : f32 to vector<64x64xf32>
    %75 = arith.select %73, %74, %63 : vector<64x64xi1>, vector<64x64xf32>
    %cst_31 = arith.constant dense<0xFF800000> : vector<64xf32>
    %76 = vector.multi_reduction <maximumf>, %75, %cst_31 [0] : vector<64x64xf32> to vector<64xf32>
    %77 = vector.shape_cast %76 : vector<64xf32> to vector<1x64xf32>
    %78 = vector.broadcast %77 : vector<1x64xf32> to vector<64x64xf32>
    %79 = arith.cmpf oge, %75, %78 : vector<64x64xf32>
    %c64_i32_32 = arith.constant 64 : i32
    %80 = vector.broadcast %c64_i32_32 : i32 to vector<64x64xi32>
    %81 = arith.select %79, %15, %80 : vector<64x64xi1>, vector<64x64xi32>
    %cst_33 = arith.constant dense<2147483647> : vector<64xi32>
    %82 = vector.multi_reduction <minsi>, %81, %cst_33 [0] : vector<64x64xi32> to vector<64xi32>
    %83 = vector.shape_cast %82 : vector<64xi32> to vector<1x64xi32>
    %84 = vector.broadcast %83 : vector<1x64xi32> to vector<64x64xi32>
    %85 = arith.cmpi eq, %15, %84 : vector<64x64xi32>
    %cst_34 = arith.constant 0xFF800000 : f32
    %86 = vector.broadcast %cst_34 : f32 to vector<64x64xf32>
    %87 = arith.select %85, %86, %75 : vector<64x64xi1>, vector<64x64xf32>
    %cst_35 = arith.constant dense<0xFF800000> : vector<64xf32>
    %88 = vector.multi_reduction <maximumf>, %87, %cst_35 [0] : vector<64x64xf32> to vector<64xf32>
    %89 = vector.shape_cast %88 : vector<64xf32> to vector<1x64xf32>
    %90 = vector.broadcast %89 : vector<1x64xf32> to vector<64x64xf32>
    %91 = arith.cmpf oge, %87, %90 : vector<64x64xf32>
    %c64_i32_36 = arith.constant 64 : i32
    %92 = vector.broadcast %c64_i32_36 : i32 to vector<64x64xi32>
    %93 = arith.select %91, %15, %92 : vector<64x64xi1>, vector<64x64xi32>
    %cst_37 = arith.constant dense<2147483647> : vector<64xi32>
    %94 = vector.multi_reduction <minsi>, %93, %cst_37 [0] : vector<64x64xi32> to vector<64xi32>
    %95 = vector.shape_cast %94 : vector<64xi32> to vector<1x64xi32>
    %96 = vector.broadcast %95 : vector<1x64xi32> to vector<64x64xi32>
    %97 = arith.cmpi eq, %15, %96 : vector<64x64xi32>
    %cst_38 = arith.constant 0xFF800000 : f32
    %98 = vector.broadcast %cst_38 : f32 to vector<64x64xf32>
    %99 = arith.select %97, %98, %87 : vector<64x64xi1>, vector<64x64xf32>
    %cst_39 = arith.constant dense<0xFF800000> : vector<64xf32>
    %100 = vector.multi_reduction <maximumf>, %99, %cst_39 [0] : vector<64x64xf32> to vector<64xf32>
    %101 = vector.shape_cast %100 : vector<64xf32> to vector<1x64xf32>
    %102 = vector.broadcast %101 : vector<1x64xf32> to vector<64x64xf32>
    %103 = arith.cmpf oge, %99, %102 : vector<64x64xf32>
    %c64_i32_40 = arith.constant 64 : i32
    %104 = vector.broadcast %c64_i32_40 : i32 to vector<64x64xi32>
    %105 = arith.select %103, %15, %104 : vector<64x64xi1>, vector<64x64xi32>
    %cst_41 = arith.constant dense<2147483647> : vector<64xi32>
    %106 = vector.multi_reduction <minsi>, %105, %cst_41 [0] : vector<64x64xi32> to vector<64xi32>
    %107 = vector.shape_cast %106 : vector<64xi32> to vector<1x64xi32>
    %108 = vector.broadcast %107 : vector<1x64xi32> to vector<64x64xi32>
    %109 = arith.cmpi eq, %15, %108 : vector<64x64xi32>
    %cst_42 = arith.constant 0xFF800000 : f32
    %110 = vector.broadcast %cst_42 : f32 to vector<64x64xf32>
    %111 = arith.select %109, %110, %99 : vector<64x64xi1>, vector<64x64xf32>
    %cst_43 = arith.constant dense<0xFF800000> : vector<64xf32>
    %112 = vector.multi_reduction <maximumf>, %111, %cst_43 [0] : vector<64x64xf32> to vector<64xf32>
    %113 = vector.shape_cast %112 : vector<64xf32> to vector<1x64xf32>
    %114 = vector.broadcast %113 : vector<1x64xf32> to vector<64x64xf32>
    %115 = arith.cmpf oge, %111, %114 : vector<64x64xf32>
    %c64_i32_44 = arith.constant 64 : i32
    %116 = vector.broadcast %c64_i32_44 : i32 to vector<64x64xi32>
    %117 = arith.select %115, %15, %116 : vector<64x64xi1>, vector<64x64xi32>
    %cst_45 = arith.constant dense<2147483647> : vector<64xi32>
    %118 = vector.multi_reduction <minsi>, %117, %cst_45 [0] : vector<64x64xi32> to vector<64xi32>
    %119 = vector.shape_cast %118 : vector<64xi32> to vector<1x64xi32>
    %120 = vector.broadcast %119 : vector<1x64xi32> to vector<64x64xi32>
    %121 = arith.cmpi eq, %15, %120 : vector<64x64xi32>
    %cst_46 = arith.constant 0xFF800000 : f32
    %122 = vector.broadcast %cst_46 : f32 to vector<64x64xf32>
    %123 = arith.select %121, %122, %111 : vector<64x64xi1>, vector<64x64xf32>
    %cst_47 = arith.constant dense<0xFF800000> : vector<64xf32>
    %124 = vector.multi_reduction <maximumf>, %123, %cst_47 [0] : vector<64x64xf32> to vector<64xf32>
    %125 = vector.shape_cast %124 : vector<64xf32> to vector<1x64xf32>
    %126 = vector.broadcast %125 : vector<1x64xf32> to vector<64x64xf32>
    %127 = arith.cmpf oge, %123, %126 : vector<64x64xf32>
    %c64_i32_48 = arith.constant 64 : i32
    %128 = vector.broadcast %c64_i32_48 : i32 to vector<64x64xi32>
    %129 = arith.select %127, %15, %128 : vector<64x64xi1>, vector<64x64xi32>
    %cst_49 = arith.constant dense<2147483647> : vector<64xi32>
    %130 = vector.multi_reduction <minsi>, %129, %cst_49 [0] : vector<64x64xi32> to vector<64xi32>
    %131 = vector.shape_cast %130 : vector<64xi32> to vector<1x64xi32>
    %132 = vector.broadcast %131 : vector<1x64xi32> to vector<64x64xi32>
    %133 = arith.cmpi eq, %15, %132 : vector<64x64xi32>
    %cst_50 = arith.constant 0xFF800000 : f32
    %134 = vector.broadcast %cst_50 : f32 to vector<64x64xf32>
    %135 = arith.select %133, %134, %123 : vector<64x64xi1>, vector<64x64xf32>
    %cst_51 = arith.constant dense<0xFF800000> : vector<64xf32>
    %136 = vector.multi_reduction <maximumf>, %135, %cst_51 [0] : vector<64x64xf32> to vector<64xf32>
    %137 = vector.shape_cast %136 : vector<64xf32> to vector<1x64xf32>
    %138 = vector.broadcast %137 : vector<1x64xf32> to vector<64x64xf32>
    %139 = arith.cmpf oge, %135, %138 : vector<64x64xf32>
    %c64_i32_52 = arith.constant 64 : i32
    %140 = vector.broadcast %c64_i32_52 : i32 to vector<64x64xi32>
    %141 = arith.select %139, %15, %140 : vector<64x64xi1>, vector<64x64xi32>
    %cst_53 = arith.constant dense<2147483647> : vector<64xi32>
    %142 = vector.multi_reduction <minsi>, %141, %cst_53 [0] : vector<64x64xi32> to vector<64xi32>
    %143 = vector.shape_cast %142 : vector<64xi32> to vector<1x64xi32>
    %144 = vector.broadcast %143 : vector<1x64xi32> to vector<64x64xi32>
    %145 = arith.cmpi eq, %15, %144 : vector<64x64xi32>
    %cst_54 = arith.constant 0xFF800000 : f32
    %146 = vector.broadcast %cst_54 : f32 to vector<64x64xf32>
    %147 = arith.select %145, %146, %135 : vector<64x64xi1>, vector<64x64xf32>
    %cst_55 = arith.constant dense<0xFF800000> : vector<64xf32>
    %148 = vector.multi_reduction <maximumf>, %147, %cst_55 [0] : vector<64x64xf32> to vector<64xf32>
    %149 = vector.shape_cast %148 : vector<64xf32> to vector<1x64xf32>
    %150 = vector.broadcast %149 : vector<1x64xf32> to vector<64x64xf32>
    %151 = arith.cmpf oge, %147, %150 : vector<64x64xf32>
    %c64_i32_56 = arith.constant 64 : i32
    %152 = vector.broadcast %c64_i32_56 : i32 to vector<64x64xi32>
    %153 = arith.select %151, %15, %152 : vector<64x64xi1>, vector<64x64xi32>
    %cst_57 = arith.constant dense<2147483647> : vector<64xi32>
    %154 = vector.multi_reduction <minsi>, %153, %cst_57 [0] : vector<64x64xi32> to vector<64xi32>
    %155 = vector.shape_cast %154 : vector<64xi32> to vector<1x64xi32>
    %156 = vector.broadcast %155 : vector<1x64xi32> to vector<64x64xi32>
    %157 = arith.cmpi eq, %15, %156 : vector<64x64xi32>
    %cst_58 = arith.constant 0xFF800000 : f32
    %158 = vector.broadcast %cst_58 : f32 to vector<64x64xf32>
    %159 = arith.select %157, %158, %147 : vector<64x64xi1>, vector<64x64xf32>
    %cst_59 = arith.constant dense<0xFF800000> : vector<64xf32>
    %160 = vector.multi_reduction <maximumf>, %159, %cst_59 [0] : vector<64x64xf32> to vector<64xf32>
    %161 = vector.shape_cast %160 : vector<64xf32> to vector<1x64xf32>
    %162 = vector.broadcast %161 : vector<1x64xf32> to vector<64x64xf32>
    %163 = arith.cmpf oge, %159, %162 : vector<64x64xf32>
    %c64_i32_60 = arith.constant 64 : i32
    %164 = vector.broadcast %c64_i32_60 : i32 to vector<64x64xi32>
    %165 = arith.select %163, %15, %164 : vector<64x64xi1>, vector<64x64xi32>
    %cst_61 = arith.constant dense<2147483647> : vector<64xi32>
    %166 = vector.multi_reduction <minsi>, %165, %cst_61 [0] : vector<64x64xi32> to vector<64xi32>
    %167 = vector.shape_cast %166 : vector<64xi32> to vector<1x64xi32>
    %168 = vector.broadcast %167 : vector<1x64xi32> to vector<64x64xi32>
    %169 = arith.cmpi eq, %15, %168 : vector<64x64xi32>
    %cst_62 = arith.constant 0xFF800000 : f32
    %170 = vector.broadcast %cst_62 : f32 to vector<64x64xf32>
    %171 = arith.select %169, %170, %159 : vector<64x64xi1>, vector<64x64xf32>
    %cst_63 = arith.constant dense<0xFF800000> : vector<64xf32>
    %172 = vector.multi_reduction <maximumf>, %171, %cst_63 [0] : vector<64x64xf32> to vector<64xf32>
    %173 = vector.shape_cast %172 : vector<64xf32> to vector<1x64xf32>
    %174 = vector.broadcast %173 : vector<1x64xf32> to vector<64x64xf32>
    %175 = arith.cmpf oge, %171, %174 : vector<64x64xf32>
    %c64_i32_64 = arith.constant 64 : i32
    %176 = vector.broadcast %c64_i32_64 : i32 to vector<64x64xi32>
    %177 = arith.select %175, %15, %176 : vector<64x64xi1>, vector<64x64xi32>
    %cst_65 = arith.constant dense<2147483647> : vector<64xi32>
    %178 = vector.multi_reduction <minsi>, %177, %cst_65 [0] : vector<64x64xi32> to vector<64xi32>
    %179 = vector.shape_cast %178 : vector<64xi32> to vector<1x64xi32>
    %180 = vector.broadcast %179 : vector<1x64xi32> to vector<64x64xi32>
    %181 = arith.cmpi eq, %15, %180 : vector<64x64xi32>
    %cst_66 = arith.constant 0xFF800000 : f32
    %182 = vector.broadcast %cst_66 : f32 to vector<64x64xf32>
    %183 = arith.select %181, %182, %171 : vector<64x64xi1>, vector<64x64xf32>
    %cst_67 = arith.constant dense<0xFF800000> : vector<64xf32>
    %184 = vector.multi_reduction <maximumf>, %183, %cst_67 [0] : vector<64x64xf32> to vector<64xf32>
    %185 = vector.shape_cast %184 : vector<64xf32> to vector<1x64xf32>
    %186 = vector.broadcast %185 : vector<1x64xf32> to vector<64x64xf32>
    %187 = arith.cmpf oge, %183, %186 : vector<64x64xf32>
    %c64_i32_68 = arith.constant 64 : i32
    %188 = vector.broadcast %c64_i32_68 : i32 to vector<64x64xi32>
    %189 = arith.select %187, %15, %188 : vector<64x64xi1>, vector<64x64xi32>
    %cst_69 = arith.constant dense<2147483647> : vector<64xi32>
    %190 = vector.multi_reduction <minsi>, %189, %cst_69 [0] : vector<64x64xi32> to vector<64xi32>
    %191 = vector.shape_cast %190 : vector<64xi32> to vector<1x64xi32>
    %192 = vector.broadcast %191 : vector<1x64xi32> to vector<64x64xi32>
    %193 = arith.cmpi eq, %15, %192 : vector<64x64xi32>
    %cst_70 = arith.constant 0xFF800000 : f32
    %194 = vector.broadcast %cst_70 : f32 to vector<64x64xf32>
    %195 = arith.select %193, %194, %183 : vector<64x64xi1>, vector<64x64xf32>
    %cst_71 = arith.constant dense<0xFF800000> : vector<64xf32>
    %196 = vector.multi_reduction <maximumf>, %195, %cst_71 [0] : vector<64x64xf32> to vector<64xf32>
    %197 = vector.shape_cast %196 : vector<64xf32> to vector<1x64xf32>
    %198 = vector.broadcast %197 : vector<1x64xf32> to vector<64x64xf32>
    %199 = arith.cmpf oge, %195, %198 : vector<64x64xf32>
    %c64_i32_72 = arith.constant 64 : i32
    %200 = vector.broadcast %c64_i32_72 : i32 to vector<64x64xi32>
    %201 = arith.select %199, %15, %200 : vector<64x64xi1>, vector<64x64xi32>
    %cst_73 = arith.constant dense<2147483647> : vector<64xi32>
    %202 = vector.multi_reduction <minsi>, %201, %cst_73 [0] : vector<64x64xi32> to vector<64xi32>
    %203 = vector.shape_cast %202 : vector<64xi32> to vector<1x64xi32>
    %204 = vector.broadcast %203 : vector<1x64xi32> to vector<64x64xi32>
    %205 = arith.cmpi eq, %15, %204 : vector<64x64xi32>
    %cst_74 = arith.constant 0xFF800000 : f32
    %206 = vector.broadcast %cst_74 : f32 to vector<64x64xf32>
    %207 = arith.select %205, %206, %195 : vector<64x64xi1>, vector<64x64xf32>
    %cst_75 = arith.constant dense<0xFF800000> : vector<64xf32>
    %208 = vector.multi_reduction <maximumf>, %207, %cst_75 [0] : vector<64x64xf32> to vector<64xf32>
    %209 = vector.shape_cast %208 : vector<64xf32> to vector<1x64xf32>
    %210 = vector.broadcast %209 : vector<1x64xf32> to vector<64x64xf32>
    %211 = arith.cmpf oge, %207, %210 : vector<64x64xf32>
    %c64_i32_76 = arith.constant 64 : i32
    %212 = vector.broadcast %c64_i32_76 : i32 to vector<64x64xi32>
    %213 = arith.select %211, %15, %212 : vector<64x64xi1>, vector<64x64xi32>
    %cst_77 = arith.constant dense<2147483647> : vector<64xi32>
    %214 = vector.multi_reduction <minsi>, %213, %cst_77 [0] : vector<64x64xi32> to vector<64xi32>
    %215 = vector.shape_cast %214 : vector<64xi32> to vector<1x64xi32>
    %216 = vector.broadcast %215 : vector<1x64xi32> to vector<64x64xi32>
    %217 = arith.cmpi eq, %15, %216 : vector<64x64xi32>
    %cst_78 = arith.constant 0xFF800000 : f32
    %218 = vector.broadcast %cst_78 : f32 to vector<64x64xf32>
    %219 = arith.select %217, %218, %207 : vector<64x64xi1>, vector<64x64xf32>
    %cst_79 = arith.constant dense<0xFF800000> : vector<64xf32>
    %220 = vector.multi_reduction <maximumf>, %219, %cst_79 [0] : vector<64x64xf32> to vector<64xf32>
    %221 = vector.shape_cast %220 : vector<64xf32> to vector<1x64xf32>
    %222 = vector.broadcast %221 : vector<1x64xf32> to vector<64x64xf32>
    %223 = arith.cmpf oge, %219, %222 : vector<64x64xf32>
    %c64_i32_80 = arith.constant 64 : i32
    %224 = vector.broadcast %c64_i32_80 : i32 to vector<64x64xi32>
    %225 = arith.select %223, %15, %224 : vector<64x64xi1>, vector<64x64xi32>
    %cst_81 = arith.constant dense<2147483647> : vector<64xi32>
    %226 = vector.multi_reduction <minsi>, %225, %cst_81 [0] : vector<64x64xi32> to vector<64xi32>
    %227 = vector.shape_cast %226 : vector<64xi32> to vector<1x64xi32>
    %228 = vector.broadcast %227 : vector<1x64xi32> to vector<64x64xi32>
    %229 = arith.cmpi eq, %15, %228 : vector<64x64xi32>
    %cst_82 = arith.constant 0xFF800000 : f32
    %230 = vector.broadcast %cst_82 : f32 to vector<64x64xf32>
    %231 = arith.select %229, %230, %219 : vector<64x64xi1>, vector<64x64xf32>
    %cst_83 = arith.constant dense<0xFF800000> : vector<64xf32>
    %232 = vector.multi_reduction <maximumf>, %231, %cst_83 [0] : vector<64x64xf32> to vector<64xf32>
    %233 = vector.shape_cast %232 : vector<64xf32> to vector<1x64xf32>
    %234 = vector.broadcast %233 : vector<1x64xf32> to vector<64x64xf32>
    %235 = arith.cmpf oge, %231, %234 : vector<64x64xf32>
    %c64_i32_84 = arith.constant 64 : i32
    %236 = vector.broadcast %c64_i32_84 : i32 to vector<64x64xi32>
    %237 = arith.select %235, %15, %236 : vector<64x64xi1>, vector<64x64xi32>
    %cst_85 = arith.constant dense<2147483647> : vector<64xi32>
    %238 = vector.multi_reduction <minsi>, %237, %cst_85 [0] : vector<64x64xi32> to vector<64xi32>
    %239 = vector.shape_cast %238 : vector<64xi32> to vector<1x64xi32>
    %240 = vector.broadcast %239 : vector<1x64xi32> to vector<64x64xi32>
    %241 = arith.cmpi eq, %15, %240 : vector<64x64xi32>
    %cst_86 = arith.constant 0xFF800000 : f32
    %242 = vector.broadcast %cst_86 : f32 to vector<64x64xf32>
    %243 = arith.select %241, %242, %231 : vector<64x64xi1>, vector<64x64xf32>
    %cst_87 = arith.constant dense<0xFF800000> : vector<64xf32>
    %244 = vector.multi_reduction <maximumf>, %243, %cst_87 [0] : vector<64x64xf32> to vector<64xf32>
    %245 = vector.shape_cast %244 : vector<64xf32> to vector<1x64xf32>
    %246 = vector.broadcast %245 : vector<1x64xf32> to vector<64x64xf32>
    %247 = arith.cmpf oge, %243, %246 : vector<64x64xf32>
    %c64_i32_88 = arith.constant 64 : i32
    %248 = vector.broadcast %c64_i32_88 : i32 to vector<64x64xi32>
    %249 = arith.select %247, %15, %248 : vector<64x64xi1>, vector<64x64xi32>
    %cst_89 = arith.constant dense<2147483647> : vector<64xi32>
    %250 = vector.multi_reduction <minsi>, %249, %cst_89 [0] : vector<64x64xi32> to vector<64xi32>
    %251 = vector.shape_cast %250 : vector<64xi32> to vector<1x64xi32>
    %252 = tpu.concatenate %23, %35, %47, %59, %71, %83, %95, %107, %119, %131, %143, %155, %167, %179, %191, %203 in 0 : vector<1x64xi32>, vector<1x64xi32>, vector<1x64xi32>, vector<1x64xi32>, vector<1x64xi32>, vector<1x64xi32>, vector<1x64xi32>, vector<1x64xi32>, vector<1x64xi32>, vector<1x64xi32>, vector<1x64xi32>, vector<1x64xi32>, vector<1x64xi32>, vector<1x64xi32>, vector<1x64xi32>, vector<1x64xi32> -> vector<16x64xi32>
    %253 = tpu.concatenate %215, %227, %239, %251 in 0 : vector<1x64xi32>, vector<1x64xi32>, vector<1x64xi32>, vector<1x64xi32> -> vector<4x64xi32>
    %254 = tpu.concatenate %252, %253 in 0 : vector<16x64xi32>, vector<4x64xi32> -> vector<20x64xi32>
    %c0_90 = arith.constant 0 : index
    %c0_91 = arith.constant 0 : index
    %c0_92 = arith.constant 0 : index
    %255 = vector.load %arg6[%c0_90, %c0_91, %c0_92] : memref<1x20x64xi32, #tpu.memory_space<vmem>>, vector<1x20x64xi32>
    %256 = vector.shape_cast %255 : vector<1x20x64xi32> to vector<20x64xi32>
    %257 = vector.shape_cast %254 : vector<20x64xi32> to vector<1x20x64xi32>
    tpu.vector_store %arg6[%c0_90, %c0_91, %c0_92], %257 {strides = array<i32>} : memref<1x20x64xi32, #tpu.memory_space<vmem>>, vector<1x20x64xi32>,
    return
  }
  func.func @transform_0(%arg0: i32, %arg1: i32) -> (i32, i32, i32) {
    %c0_i32 = arith.constant 0 : i32
    %c0_i32_0 = arith.constant 0 : i32
    %c0_i32_1 = arith.constant 0 : i32
    return %arg0, %c0_i32, %c0_i32_0 : i32, i32, i32
  }
  func.func @transform_1(%arg0: i32, %arg1: i32) -> (i32, i32, i32) {
    %c0_i32 = arith.constant 0 : i32
    %c0_i32_0 = arith.constant 0 : i32
    return %arg0, %c0_i32, %arg1 : i32, i32, i32
  }
  func.func @transform_2(%arg0: i32, %arg1: i32) -> (i32, i32, i32) {
    %c0_i32 = arith.constant 0 : i32
    %c0_i32_0 = arith.constant 0 : i32
    %c0_i32_1 = arith.constant 0 : i32
    return %arg0, %c0_i32, %c0_i32_0 : i32, i32, i32
  }
  func.func @transform_3(%arg0: i32, %arg1: i32) -> (i32, i32, i32) {
    %c0_i32 = arith.constant 0 : i32
    %c0_i32_0 = arith.constant 0 : i32
    return %arg0, %c0_i32, %arg1 : i32, i32, i32
  }
  func.func @transform_4(%arg0: i32, %arg1: i32) -> (i32, i32, i32) {
    %c0_i32 = arith.constant 0 : i32
    %c0_i32_0 = arith.constant 0 : i32
    return %arg0, %c0_i32, %arg1 : i32, i32, i32
  }
}

</mosaic_0001>

<llo_original>
// kernel: tpu_custom_call.1
$region0: #{tpu_custom_call.1}
  #allocation0 [shape = 'u32[]', space=smem, size = 0x4, offset = 0x4, fixed_abs, tag = 'smem constant byte address 0x4 - core index']
  #allocation1 [shape = 'u32[144,128]{1,0:T(1,128)}', space=vmem, size = 0x12000, scoped, tag = 'internal scratch']
  %s0 = inlined_call_operand.vmem [shape: f32[2,64,3], index: 0, kind: input, shape index: {}]
  %s1 = inlined_call_operand.vmem [shape: f32[2,3,64], index: 1, kind: input, shape index: {}]
  %s2 = inlined_call_operand.vmem [shape: f32[2,64,1], index: 2, kind: input, shape index: {}]
  %s3 = inlined_call_operand.vmem [shape: f32[2,1,64], index: 3, kind: input, shape index: {}]
  %s4 = inlined_call_operand.vmem [shape: s32[2,20,64], index: 4, kind: output, shape index: {}]
  %s5 = sld [smem:[#allocation0]]
  $region49: #{tpu_custom_call.1} parent=0
    _
  %s7 = ssub.s32 1, %s5
  %s8 = scalar_select 0, %s7, %s5
  loop: start=0, step=1, limit=4
  $region2: #{tpu_custom_call.1} parent=0 // loop_pre_header
    _
  $region3: #{tpu_custom_call.1} parent=0 // loop_header
    %s10 = sphi 0, %s14
    %p11 = scmp.ge.s32.totalorder %s10, 4
    %s17 = sphi 0, %s29
    %s18 = sphi 0, %s25
    %s19 = sphi 0, %s17
    %s20 = sphi 0, %s18
    %s21 = sphi 0, %s19
    %s22 = sphi 0, %s20
    %s32 = sphi 0, %s34
    %s35 = sphi 0, %s32
    %s36 = sphi 0, %s35
    %s52 = sphi 0, %s36
    %s60 = sphi 0, %s62
    %s63 = sphi 0, %s60
    %s64 = sphi 0, %s63
    %s80 = sphi 0, %s64
    %s86 = sphi 0, %s88
    %s89 = sphi 0, %s86
    %s90 = sphi 0, %s89
    %s106 = sphi 0, %s90
    %s114 = sphi 0, %s116
    %s117 = sphi 0, %s114
    %s118 = sphi 0, %s117
    %s134 = sphi 0, %s118
    %s142 = sphi 0, %s144
    %s145 = sphi 0, %s142
    %s146 = sphi 0, %s145
    %s162 = sphi 0, %s146
  $region4: #{tpu_custom_call.1} parent=0 // loop_header_branch
    %13 = sbr.rel (%p11) target = $region8
  $region5: #{tpu_custom_call.1} parent=0 // loop_body
    %s15 = ssub.s32 %s10, 1
    %s16 = ssub.s32 %s10, 2
    %s23 = sadd.s32 1, %s18
    %p24 = scmp.ge.s32.totalorder %s23, 1
    %s25 = scalar_select %p24, 0, %s23
    %s26 = sadd.s32 1, %s17
    %s27 = scalar_select %p24, %s26, %s17
    %p28 = scmp.ge.s32.totalorder %s27, 2
    %s29 = scalar_select %p28, 0, %s27
    %s30 = ssub.s32 %s17, %s29
    %p31 = scmp.eq.s32.totalorder %s30, 0
    %s33 = sadd.s32 %s32, 1
    %s34 = scalar_select %p31, %s32, %s33
    %p37 = pneg %p31
    %p38 = scmp.eq.s32.totalorder %s10, 1
    %p39 = por %p37, %p38
    %p40 = scmp.ne.s32.totalorder %s32, %s35
    %p41 = scmp.eq.s32.totalorder %s10, 0
    %p42 = por %p40, %p41
    %p43 = scmp.ne.s32.totalorder %s32, %s35
    %p44 = scmp.eq.s32.totalorder %s15, 1
    %p45 = por %p43, %p44
    %p46 = scmp.ne.s32.totalorder %s35, %s36
    %p47 = scmp.eq.s32.totalorder %s15, 0
    %p48 = por %p46, %p47
    %p49 = scmp.ne.s32.totalorder %s35, %s36
    %p50 = scmp.eq.s32.totalorder %s16, 1
    %p51 = por %p49, %p50
    %p53 = scmp.ne.s32.totalorder %s36, %s52
    %p54 = scmp.eq.s32.totalorder %s16, 0
    %p55 = por %p53, %p54
    %s56 = ssub.s32 %s17, %s29
    %s57 = ssub.s32 %s18, %s25
    %s58 = sor.u32 %s56, %s57
    %p59 = scmp.eq.s32.totalorder %s58, 0
    %s61 = sadd.s32 %s60, 1
    %s62 = scalar_select %p59, %s60, %s61
    %p65 = pneg %p59
    %p66 = scmp.eq.s32.totalorder %s10, 1
    %p67 = por %p65, %p66
    %p68 = scmp.ne.s32.totalorder %s60, %s63
    %p69 = scmp.eq.s32.totalorder %s10, 0
    %p70 = por %p68, %p69
    %p71 = scmp.ne.s32.totalorder %s60, %s63
    %p72 = scmp.eq.s32.totalorder %s15, 1
    %p73 = por %p71, %p72
    %p74 = scmp.ne.s32.totalorder %s63, %s64
    %p75 = scmp.eq.s32.totalorder %s15, 0
    %p76 = por %p74, %p75
    %p77 = scmp.ne.s32.totalorder %s63, %s64
    %p78 = scmp.eq.s32.totalorder %s16, 1
    %p79 = por %p77, %p78
    %p81 = scmp.ne.s32.totalorder %s64, %s80
    %p82 = scmp.eq.s32.totalorder %s16, 0
    %p83 = por %p81, %p82
    %s84 = ssub.s32 %s17, %s29
    %p85 = scmp.eq.s32.totalorder %s84, 0
    %s87 = sadd.s32 %s86, 1
    %s88 = scalar_select %p85, %s86, %s87
    %p91 = pneg %p85
    %p92 = scmp.eq.s32.totalorder %s10, 1
    %p93 = por %p91, %p92
    %p94 = scmp.ne.s32.totalorder %s86, %s89
    %p95 = scmp.eq.s32.totalorder %s10, 0
    %p96 = por %p94, %p95
    %p97 = scmp.ne.s32.totalorder %s86, %s89
    %p98 = scmp.eq.s32.totalorder %s15, 1
    %p99 = por %p97, %p98
    %p100 = scmp.ne.s32.totalorder %s89, %s90
    %p101 = scmp.eq.s32.totalorder %s15, 0
    %p102 = por %p100, %p101
    %p103 = scmp.ne.s32.totalorder %s89, %s90
    %p104 = scmp.eq.s32.totalorder %s16, 1
    %p105 = por %p103, %p104
    %p107 = scmp.ne.s32.totalorder %s90, %s106
    %p108 = scmp.eq.s32.totalorder %s16, 0
    %p109 = por %p107, %p108
    %s110 = ssub.s32 %s17, %s29
    %s111 = ssub.s32 %s18, %s25
    %s112 = sor.u32 %s110, %s111
    %p113 = scmp.eq.s32.totalorder %s112, 0
    %s115 = sadd.s32 %s114, 1
    %s116 = scalar_select %p113, %s114, %s115
    %p119 = pneg %p113
    %p120 = scmp.eq.s32.totalorder %s10, 1
    %p121 = por %p119, %p120
    %p122 = scmp.ne.s32.totalorder %s114, %s117
    %p123 = scmp.eq.s32.totalorder %s10, 0
    %p124 = por %p122, %p123
    %p125 = scmp.ne.s32.totalorder %s114, %s117
    %p126 = scmp.eq.s32.totalorder %s15, 1
    %p127 = por %p125, %p126
    %p128 = scmp.ne.s32.totalorder %s117, %s118
    %p129 = scmp.eq.s32.totalorder %s15, 0
    %p130 = por %p128, %p129
    %p131 = scmp.ne.s32.totalorder %s117, %s118
    %p132 = scmp.eq.s32.totalorder %s16, 1
    %p133 = por %p131, %p132
    %p135 = scmp.ne.s32.totalorder %s118, %s134
    %p136 = scmp.eq.s32.totalorder %s16, 0
    %p137 = por %p135, %p136
    %s138 = ssub.s32 %s17, %s29
    %s139 = ssub.s32 %s18, %s25
    %s140 = sor.u32 %s138, %s139
    %p141 = scmp.eq.s32.totalorder %s140, 0
    %s143 = sadd.s32 %s142, 1
    %s144 = scalar_select %p141, %s142, %s143
    %p147 = pneg %p141
    %p148 = scmp.eq.s32.totalorder %s10, 1
    %p149 = por %p147, %p148
    %p150 = scmp.ne.s32.totalorder %s142, %s145
    %p151 = scmp.eq.s32.totalorder %s10, 0
    %p152 = por %p150, %p151
    %p153 = scmp.ne.s32.totalorder %s142, %s145
    %p154 = scmp.eq.s32.totalorder %s15, 1
    %p155 = por %p153, %p154
    %p156 = scmp.ne.s32.totalorder %s145, %s146
    %p157 = scmp.eq.s32.totalorder %s15, 0
    %p158 = por %p156, %p157
    %p159 = scmp.ne.s32.totalorder %s145, %s146
    %p160 = scmp.eq.s32.totalorder %s16, 1
    %p161 = por %p159, %p160
    %p163 = scmp.ne.s32.totalorder %s146, %s162
    %p164 = scmp.eq.s32.totalorder %s16, 0
    %p165 = por %p163, %p164
    %p166 = scmp.le.s32.totalorder 1, %s10
    %p167 = scmp.lt.s32.totalorder %s10, 3
    %p168 = pnand %p166, %p167
    %p169 = pneg %p168
    // Predicated region
    $region9: #{tpu_custom_call.1} parent=5 // pred_check
      _
    $region10: #{tpu_custom_call.1} parent=5 // pred_check_branch
      %171 = sbr.rel (%p168) target = $region12
    $region11: #{tpu_custom_call.1} parent=5 // pred_region
      %s172 = ssub.s32 %s10, 1
    $region12: #{tpu_custom_call.1} parent=5 // pred_fallthru
      _
    %p173 = scmp.lt.s32.totalorder %s10, 2
    // Predicated region
    $region13: #{tpu_custom_call.1} parent=5 // pred_check
      %p174 = pneg %p173
    $region14: #{tpu_custom_call.1} parent=5 // pred_check_branch
      %176 = sbr.rel (%p174) target = $region16
    $region15: #{tpu_custom_call.1} parent=5 // pred_region
      // Predicated region
      $region17: #{tpu_custom_call.1} parent=15 // pred_check
        %p177 = pneg %p42
      $region18: #{tpu_custom_call.1} parent=15 // pred_check_branch
        %179 = sbr.rel (%p177) target = $region20
      $region19: #{tpu_custom_call.1} parent=15 // pred_region
        %p180 = scmp.lt.s32.totalorder %s17, 1
        %s181 = scalar_select %p180, %s17, 1
        %s182 = smul.addr %s181, 8
        %s183 = smul.addr %s182, 8
        %s184 = scalar_lea.vmem %s0, %s183
      $region20: #{tpu_custom_call.1} parent=15 // pred_fallthru
        _
      // Predicated region
      $region21: #{tpu_custom_call.1} parent=15 // pred_check
        %p185 = pneg %p70
      $region22: #{tpu_custom_call.1} parent=15 // pred_check_branch
        %187 = sbr.rel (%p185) target = $region24
      $region23: #{tpu_custom_call.1} parent=15 // pred_region
        %p188 = scmp.lt.s32.totalorder %s17, 1
        %s189 = scalar_select %p188, %s17, 1
        %p190 = scmp.lt.s32.totalorder %s18, 0
        %s191 = scalar_select %p190, %s18, 0
        %s192 = sadd.s32 %s191, %s189
        %s193 = smul.addr %s192, 4
        %s194 = scalar_lea.vmem %s1, %s193
      $region24: #{tpu_custom_call.1} parent=15 // pred_fallthru
        _
      // Predicated region
      $region25: #{tpu_custom_call.1} parent=15 // pred_check
        %p195 = pneg %p96
      $region26: #{tpu_custom_call.1} parent=15 // pred_check_branch
        %197 = sbr.rel (%p195) target = $region28
      $region27: #{tpu_custom_call.1} parent=15 // pred_region
        %p198 = scmp.lt.s32.totalorder %s17, 1
        %s199 = scalar_select %p198, %s17, 1
        %s200 = smul.addr %s199, 8
        %s201 = smul.addr %s200, 8
        %s202 = scalar_lea.vmem %s2, %s201
      $region28: #{tpu_custom_call.1} parent=15 // pred_fallthru
        _
      // Predicated region
      $region29: #{tpu_custom_call.1} parent=15 // pred_check
        %p203 = pneg %p124
      $region30: #{tpu_custom_call.1} parent=15 // pred_check_branch
        %205 = sbr.rel (%p203) target = $region32
      $region31: #{tpu_custom_call.1} parent=15 // pred_region
        %p206 = scmp.lt.s32.totalorder %s17, 1
        %s207 = scalar_select %p206, %s17, 1
        %p208 = scmp.lt.s32.totalorder %s18, 0
        %s209 = scalar_select %p208, %s18, 0
        %s210 = sadd.s32 %s209, %s207
        %s211 = scalar_lea.vmem %s3, %s210
      $region32: #{tpu_custom_call.1} parent=15 // pred_fallthru
        _
    $region16: #{tpu_custom_call.1} parent=5 // pred_fallthru
      _
    %p212 = scmp.le.s32.totalorder 1, %s10
    %p213 = scmp.lt.s32.totalorder %s10, 3
    %p214 = pnand %p212, %p213
    %p215 = pneg %p214
    // Predicated region
    $region33: #{tpu_custom_call.1} parent=5 // pred_check
      _
    $region34: #{tpu_custom_call.1} parent=5 // pred_check_branch
      %217 = sbr.rel (%p214) target = $region36
    $region35: #{tpu_custom_call.1} parent=5 // pred_region
      %s218 = ssub.s32 %s10, 1
      %p219 = scmp.lt.s32.totalorder %s19, 1
      %s220 = scalar_select %p219, %s19, 1
      %s221 = smul.addr %s220, 8
      %s222 = smul.addr %s221, 8
      %s223 = scalar_lea.vmem %s0, %s222
      %p224 = pneg %p48
      %p225 = pneg %p45
      %p226 = scmp.lt.s32.totalorder %s19, 1
      %s227 = scalar_select %p226, %s19, 1
      %p228 = scmp.lt.s32.totalorder %s20, 0
      %s229 = scalar_select %p228, %s20, 0
      %s230 = sadd.s32 %s229, %s227
      %s231 = smul.addr %s230, 4
      %s232 = scalar_lea.vmem %s1, %s231
      %p233 = pneg %p76
      %p234 = pneg %p73
      %p235 = scmp.lt.s32.totalorder %s19, 1
      %s236 = scalar_select %p235, %s19, 1
      %s237 = smul.addr %s236, 8
      %s238 = smul.addr %s237, 8
      %s239 = scalar_lea.vmem %s2, %s238
      %p240 = pneg %p102
      %p241 = pneg %p99
      %p242 = scmp.lt.s32.totalorder %s19, 1
      %s243 = scalar_select %p242, %s19, 1
      %p244 = scmp.lt.s32.totalorder %s20, 0
      %s245 = scalar_select %p244, %s20, 0
      %s246 = sadd.s32 %s245, %s243
      %s247 = scalar_lea.vmem %s3, %s246
      %p248 = pneg %p130
      %p249 = pneg %p127
      %p250 = pneg %p158
      %p251 = pneg %p155
      %p252 = scmp.lt.s32.totalorder %s19, 1
      %s253 = scalar_select %p252, %s19, 1
      %p254 = scmp.lt.s32.totalorder %s20, 0
      %s255 = scalar_select %p254, %s20, 0
      %s256 = smul.addr %s253, 3
      %s257 = sadd.s32 %s255, %s256
      %s258 = smul.addr %s257, 8
      %s259 = scalar_lea.vmem %s4, %s258
      %p260 = scmp.lt.s32.totalorder %s19, 1
      %s261 = scalar_select %p260, %s19, 1
      %s262 = smul.addr %s261, 8
      %s263 = smul.addr %s262, 8
      %s264 = scalar_lea.vmem %s0, %s263
      %p265 = scmp.lt.s32.totalorder %s19, 1
      %s266 = scalar_select %p265, %s19, 1
      %p267 = scmp.lt.s32.totalorder %s20, 0
      %s268 = scalar_select %p267, %s20, 0
      %s269 = sadd.s32 %s268, %s266
      %s270 = smul.addr %s269, 4
      %s271 = scalar_lea.vmem %s1, %s270
      %p272 = scmp.lt.s32.totalorder %s19, 1
      %s273 = scalar_select %p272, %s19, 1
      %s274 = smul.addr %s273, 8
      %s275 = smul.addr %s274, 8
      %s276 = scalar_lea.vmem %s2, %s275
      %p277 = scmp.lt.s32.totalorder %s19, 1
      %s278 = scalar_select %p277, %s19, 1
      %p279 = scmp.lt.s32.totalorder %s20, 0
      %s280 = scalar_select %p279, %s20, 0
      %s281 = sadd.s32 %s280, %s278
      %s282 = scalar_lea.vmem %s3, %s281
      %p283 = scmp.lt.s32.totalorder %s19, 1
      %s284 = scalar_select %p283, %s19, 1
      %p285 = scmp.lt.s32.totalorder %s20, 0
      %s286 = scalar_select %p285, %s20, 0
      %s287 = smul.addr %s284, 3
      %s288 = sadd.s32 %s286, %s287
      %s289 = smul.addr %s288, 8
      %s290 = scalar_lea.vmem %s4, %s289
      %v291 = vld [vmem:[%s264] sm:$0xff]
      %v292 = vld [vmem:[%s264 + $0x8] sm:$0xff]
      %v293 = vld [vmem:[%s264 + $0x10] sm:$0xff]
      %v294 = vld [vmem:[%s264 + $0x18] sm:$0xff]
      %v295 = vld [vmem:[%s264 + $0x20] sm:$0xff]
      %v296 = vld [vmem:[%s264 + $0x28] sm:$0xff]
      %v297 = vld [vmem:[%s264 + $0x30] sm:$0xff]
      %v298 = vld [vmem:[%s264 + $0x38] sm:$0xff]
      %v299 = vld [vmem:[%s271] sm:$0x7]
      %vm300 = vcmask 23552
      %v302 = vsel %vm300, %v291, 0
      %v305 = vsel %vm300, %v292, 0
      %v308 = vsel %vm300, %v293, 0
      %v311 = vsel %vm300, %v294, 0
      %v314 = vsel %vm300, %v295, 0
      %v317 = vsel %vm300, %v296, 0
      %v320 = vsel %vm300, %v297, 0
      %v323 = vsel %vm300, %v298, 0
      %vm325 = vcmask 1042432
      %v327 = vsel %vm325, %v299, 0
      %329 = vmatprep.subr.mxu0 0.0
      %330 = vmatpush1.msra.mxu0 0.0
      %331 = vmatprep.subr.mxu0 0.0
      %332 = vmatpush1.msra.mxu0 0.0
      %333 = vmatprep.subr.mxu0 0.0
      %334 = vmatpush1.msra.mxu0 0.0
      %335 = vmatprep.subr.mxu0 0.0
      %336 = vmatpush1.msra.mxu0 0.0
      %337 = vmatprep.subr.mxu0 0.0
      %338 = vmatpush1.msra.mxu0 0.0
      %339 = vmatprep.subr.mxu0 0.0
      %340 = vmatpush1.msra.mxu0 0.0
      %341 = vmatprep.subr.mxu0 0.0
      %342 = vmatpush1.msra.mxu0 0.0
      %343 = vmatprep.subr.mxu0 0.0
      %344 = vmatpush1.msra.mxu0 0.0
      %345 = vmatprep.subr.mxu0 0.0
      %346 = vmatpush1.msra.mxu0 0.0
      %347 = vmatprep.subr.mxu0 0.0
      %348 = vmatpush1.msra.mxu0 0.0
      %349 = vmatprep.subr.mxu0 0.0
      %350 = vmatpush1.msra.mxu0 0.0
      %351 = vmatprep.subr.mxu0 0.0
      %352 = vmatpush1.msra.mxu0 0.0
      %353 = vmatprep.subr.mxu0 0.0
      %354 = vmatpush1.msra.mxu0 0.0
      %355 = vmatprep.subr.mxu0 0.0
      %356 = vmatpush1.msra.mxu0 0.0
      %357 = vmatprep.subr.mxu0 0.0
      %358 = vmatpush1.msra.mxu0 0.0
      %359 = vmatprep.subr.mxu0 0.0
      %360 = vmatpush1.msra.mxu0 %v327
      %361 = vmatprep.subr.mxu0 0.0
      %362 = vmatpush2.msra.mxu0 0.0
      %363 = vmatprep.subr.mxu0 0.0
      %364 = vmatpush2.msra.mxu0 0.0
      %365 = vmatprep.subr.mxu0 0.0
      %366 = vmatpush2.msra.mxu0 0.0
      %367 = vmatprep.subr.mxu0 0.0
      %368 = vmatpush2.msra.mxu0 0.0
      %369 = vmatprep.subr.mxu0 0.0
      %370 = vmatpush2.msra.mxu0 0.0
      %371 = vmatprep.subr.mxu0 0.0
      %372 = vmatpush2.msra.mxu0 0.0
      %373 = vmatprep.subr.mxu0 0.0
      %374 = vmatpush2.msra.mxu0 0.0
      %375 = vmatprep.subr.mxu0 0.0
      %376 = vmatpush2.msra.mxu0 0.0
      %377 = vmatprep.subr.mxu0 0.0
      %378 = vmatpush2.msra.mxu0 0.0
      %379 = vmatprep.subr.mxu0 0.0
      %380 = vmatpush2.msra.mxu0 0.0
      %381 = vmatprep.subr.mxu0 0.0
      %382 = vmatpush2.msra.mxu0 0.0
      %383 = vmatprep.subr.mxu0 0.0
      %384 = vmatpush2.msra.mxu0 0.0
      %385 = vmatprep.subr.mxu0 0.0
      %386 = vmatpush2.msra.mxu0 0.0
      %387 = vmatprep.subr.mxu0 0.0
      %388 = vmatpush2.msra.mxu0 0.0
      %389 = vmatprep.subr.mxu0 0.0
      %390 = vmatpush2.msra.mxu0 0.0
      %391 = vmatprep.subr.mxu0 0.0
      %392 = vmatpush2.msra.mxu0 0.0
      %393 = vmatprep.mubr.f32.mxu0 0.0
      %394 = vmatmul.mubr.f32.gmra.mxu0 %v302
      %v395 = vpop.f32.mrf.mxu0
      %v396 = vadd.f32 0.0, %v395
      %v397 = vpop.f32.mrf.mxu0
      %398 = vmatprep.mubr.f32.mxu0 0.0
      %399 = vmatmul.mubr.f32.gmra.mxu0 %v305
      %v400 = vpop.f32.mrf.mxu0
      %v401 = vadd.f32 0.0, %v400
      %v402 = vpop.f32.mrf.mxu0
      %403 = vmatprep.mubr.f32.mxu0 0.0
      %404 = vmatmul.mubr.f32.gmra.mxu0 %v308
      %v405 = vpop.f32.mrf.mxu0
      %v406 = vadd.f32 0.0, %v405
      %v407 = vpop.f32.mrf.mxu0
      %408 = vmatprep.mubr.f32.mxu0 0.0
      %409 = vmatmul.mubr.f32.gmra.mxu0 %v311
      %v410 = vpop.f32.mrf.mxu0
      %v411 = vadd.f32 0.0, %v410
      %v412 = vpop.f32.mrf.mxu0
      %413 = vmatprep.mubr.f32.mxu0 0.0
      %414 = vmatmul.mubr.f32.gmra.mxu0 %v314
      %v415 = vpop.f32.mrf.mxu0
      %v416 = vadd.f32 0.0, %v415
      %v417 = vpop.f32.mrf.mxu0
      %418 = vmatprep.mubr.f32.mxu0 0.0
      %419 = vmatmul.mubr.f32.gmra.mxu0 %v317
      %v420 = vpop.f32.mrf.mxu0
      %v421 = vadd.f32 0.0, %v420
      %v422 = vpop.f32.mrf.mxu0
      %423 = vmatprep.mubr.f32.mxu0 0.0
      %424 = vmatmul.mubr.f32.gmra.mxu0 %v320
      %v425 = vpop.f32.mrf.mxu0
      %v426 = vadd.f32 0.0, %v425
      %v427 = vpop.f32.mrf.mxu0
      %428 = vmatprep.mubr.f32.mxu0 0.0
      %429 = vmatmul.mubr.f32.gmra.mxu0 %v323
      %v430 = vpop.f32.mrf.mxu0
      %v431 = vadd.f32 0.0, %v430
      %v432 = vpop.f32.mrf.mxu0
      %433 = vdwg.mxu0
      %v434 = vmul.f32 %v396, 2.0
      %v435 = vmul.f32 %v401, 2.0
      %v436 = vmul.f32 %v406, 2.0
      %v437 = vmul.f32 %v411, 2.0
      %v438 = vmul.f32 %v416, 2.0
      %v439 = vmul.f32 %v421, 2.0
      %v440 = vmul.f32 %v426, 2.0
      %v441 = vmul.f32 %v431, 2.0
      %v442 = vld [vmem:[%s276] sm:$0xff]
      %v443 = vld [vmem:[%s276 + $0x8] sm:$0xff]
      %v444 = vld [vmem:[%s276 + $0x10] sm:$0xff]
      %v445 = vld [vmem:[%s276 + $0x18] sm:$0xff]
      %v446 = vld [vmem:[%s276 + $0x20] sm:$0xff]
      %v447 = vld [vmem:[%s276 + $0x28] sm:$0xff]
      %v448 = vld [vmem:[%s276 + $0x30] sm:$0xff]
      %v449 = vld [vmem:[%s276 + $0x38] sm:$0xff]
      %451 = vset.pattern.permute.xlu0 0
      %452 = vperm.xlu0 %451, %v442
      %v453 = vpop.permute.xlu0 %452
      %456 = vset.pattern.permute.xlu0 0
      %457 = vperm.xlu0 %456, %v443
      %v458 = vpop.permute.xlu0 %457
      %461 = vset.pattern.permute.xlu0 0
      %462 = vperm.xlu0 %461, %v444
      %v463 = vpop.permute.xlu0 %462
      %466 = vset.pattern.permute.xlu0 0
      %467 = vperm.xlu0 %466, %v445
      %v468 = vpop.permute.xlu0 %467
      %471 = vset.pattern.permute.xlu0 0
      %472 = vperm.xlu0 %471, %v446
      %v473 = vpop.permute.xlu0 %472
      %476 = vset.pattern.permute.xlu0 0
      %477 = vperm.xlu0 %476, %v447
      %v478 = vpop.permute.xlu0 %477
      %481 = vset.pattern.permute.xlu0 0
      %482 = vperm.xlu0 %481, %v448
      %v483 = vpop.permute.xlu0 %482
      %486 = vset.pattern.permute.xlu0 0
      %487 = vperm.xlu0 %486, %v449
      %v488 = vpop.permute.xlu0 %487
      %v490 = vsub.f32 %v434, %v453
      %v491 = vsub.f32 %v435, %v458
      %v492 = vsub.f32 %v436, %v463
      %v493 = vsub.f32 %v437, %v468
      %v494 = vsub.f32 %v438, %v473
      %v495 = vsub.f32 %v439, %v478
      %v496 = vsub.f32 %v440, %v483
      %v497 = vsub.f32 %v441, %v488
      %v498 = vld [vmem:[%s282] sm:$0x1]
      %v500 = vlaneseq
      %v501 = vshrl.u32 %v500, 7
      %v502 = vsub.s32 0, %v501
      %v503 = vrot.slane %v498, %v502
      %v505 = vsub.f32 %v490, %v503
      %v506 = vsub.f32 %v491, %v503
      %v507 = vsub.f32 %v492, %v503
      %v508 = vsub.f32 %v493, %v503
      %v509 = vsub.f32 %v494, %v503
      %v510 = vsub.f32 %v495, %v503
      %v511 = vsub.f32 %v496, %v503
      %v512 = vsub.f32 %v497, %v503
      %v513 = vlaneseq
      %v514 = vshrl.u32 %v513, 7
      %v515 = vadd.s32 %v514, 8
      %v516 = vadd.s32 %v514, 16
      %v517 = vadd.s32 %v514, 24
      %v518 = vadd.s32 %v514, 32
      %v519 = vadd.s32 %v514, 40
      %v520 = vadd.s32 %v514, 48
      %v521 = vadd.s32 %v514, 56
      %vm522 = vcmask 523264
      %v523 = vsel %vm522, %v505, -inf
      %v524 = vsel %vm522, %v506, -inf
      %v525 = vsel %vm522, %v507, -inf
      %v526 = vsel %vm522, %v508, -inf
      %v527 = vsel %vm522, %v509, -inf
      %v528 = vmax.f32 %v523, %v527
      %v529 = vsel %vm522, %v510, -inf
      %v530 = vmax.f32 %v524, %v529
      %v531 = vsel %vm522, %v511, -inf
      %v532 = vmax.f32 %v525, %v531
      %v533 = vsel %vm522, %v512, -inf
      %v534 = vmax.f32 %v526, %v533
      %v535 = vmax.f32 %v528, %v530
      %v536 = vmax.f32 %v532, %v534
      %v537 = vmax.f32 %v535, %v536
      %v538 = vrot.slane %v537, 4
      %v539 = vmax.f32 %v537, %v538
      %v540 = vrot.slane %v539, 2
      %v541 = vmax.f32 %v539, %v540
      %v542 = vrot.slane %v541, 1
      %v543 = vmax.f32 %v541, %v542
      %vm544 = vcmp.ge.f32.partialorder %v505, %v543
      %vm545 = vcmp.ge.f32.partialorder %v506, %v543
      %vm546 = vcmp.ge.f32.partialorder %v507, %v543
      %vm547 = vcmp.ge.f32.partialorder %v508, %v543
      %vm548 = vcmp.ge.f32.partialorder %v509, %v543
      %vm549 = vcmp.ge.f32.partialorder %v510, %v543
      %vm550 = vcmp.ge.f32.partialorder %v511, %v543
      %vm551 = vcmp.ge.f32.partialorder %v512, %v543
      %v552 = vsel %vm544, %v514, 64
      %v553 = vsel %vm545, %v515, 64
      %v554 = vsel %vm546, %v516, 64
      %v555 = vsel %vm547, %v517, 64
      %v556 = vsel %vm548, %v518, 64
      %v557 = vsel %vm549, %v519, 64
      %v558 = vsel %vm550, %v520, 64
      %v559 = vsel %vm551, %v521, 64
      %v560 = vsel %vm522, %v552, 2147483647
      %v561 = vsel %vm522, %v553, 2147483647
      %v562 = vsel %vm522, %v554, 2147483647
      %v563 = vsel %vm522, %v555, 2147483647
      %v564 = vsel %vm522, %v556, 2147483647
      %vm565 = vcmp.lt.s32.totalorder %v560, %v564
      %v566 = vsel %vm565, %v560, %v564
      %v567 = vsel %vm522, %v557, 2147483647
      %vm568 = vcmp.lt.s32.totalorder %v561, %v567
      %v569 = vsel %vm568, %v561, %v567
      %v570 = vsel %vm522, %v558, 2147483647
      %vm571 = vcmp.lt.s32.totalorder %v562, %v570
      %v572 = vsel %vm571, %v562, %v570
      %v573 = vsel %vm522, %v559, 2147483647
      %vm574 = vcmp.lt.s32.totalorder %v563, %v573
      %v575 = vsel %vm574, %v563, %v573
      %vm576 = vcmp.lt.s32.totalorder %v566, %v569
      %v577 = vsel %vm576, %v566, %v569
      %vm578 = vcmp.lt.s32.totalorder %v572, %v575
      %v579 = vsel %vm578, %v572, %v575
      %vm580 = vcmp.lt.s32.totalorder %v577, %v579
      %v581 = vsel %vm580, %v577, %v579
      %v582 = vrot.slane %v581, 4
      %vm583 = vcmp.lt.s32.totalorder %v581, %v582
      %v584 = vsel %vm583, %v581, %v582
      %v585 = vrot.slane %v584, 2
      %vm586 = vcmp.lt.s32.totalorder %v584, %v585
      %v587 = vsel %vm586, %v584, %v585
      %v588 = vrot.slane %v587, 1
      %vm589 = vcmp.lt.s32.totalorder %v587, %v588
      %v590 = vsel %vm589, %v587, %v588
      %vm591 = vcmp.eq.s32.totalorder %v514, %v590
      %vm592 = vcmp.eq.s32.totalorder %v515, %v590
      %vm593 = vcmp.eq.s32.totalorder %v516, %v590
      %vm594 = vcmp.eq.s32.totalorder %v517, %v590
      %vm595 = vcmp.eq.s32.totalorder %v518, %v590
      %vm596 = vcmp.eq.s32.totalorder %v519, %v590
      %vm597 = vcmp.eq.s32.totalorder %v520, %v590
      %vm598 = vcmp.eq.s32.totalorder %v521, %v590
      %v599 = vsel %vm591, -inf, %v505
      %v600 = vsel %vm592, -inf, %v506
      %v601 = vsel %vm593, -inf, %v507
      %v602 = vsel %vm594, -inf, %v508
      %v603 = vsel %vm595, -inf, %v509
      %v604 = vsel %vm596, -inf, %v510
      %v605 = vsel %vm597, -inf, %v511
      %v606 = vsel %vm598, -inf, %v512
      %v607 = vsel %vm522, %v599, -inf
      %v608 = vsel %vm522, %v600, -inf
      %v609 = vsel %vm522, %v601, -inf
      %v610 = vsel %vm522, %v602, -inf
      %v611 = vsel %vm522, %v603, -inf
      %v612 = vmax.f32 %v607, %v611
      %v613 = vsel %vm522, %v604, -inf
      %v614 = vmax.f32 %v608, %v613
      %v615 = vsel %vm522, %v605, -inf
      %v616 = vmax.f32 %v609, %v615
      %v617 = vsel %vm522, %v606, -inf
      %v618 = vmax.f32 %v610, %v617
      %v619 = vmax.f32 %v612, %v614
      %v620 = vmax.f32 %v616, %v618
      %v621 = vmax.f32 %v619, %v620
      %v622 = vrot.slane %v621, 4
      %v623 = vmax.f32 %v621, %v622
      %v624 = vrot.slane %v623, 2
      %v625 = vmax.f32 %v623, %v624
      %v626 = vrot.slane %v625, 1
      %v627 = vmax.f32 %v625, %v626
      %vm628 = vcmp.ge.f32.partialorder %v599, %v627
      %vm629 = vcmp.ge.f32.partialorder %v600, %v627
      %vm630 = vcmp.ge.f32.partialorder %v601, %v627
      %vm631 = vcmp.ge.f32.partialorder %v602, %v627
      %vm632 = vcmp.ge.f32.partialorder %v603, %v627
      %vm633 = vcmp.ge.f32.partialorder %v604, %v627
      %vm634 = vcmp.ge.f32.partialorder %v605, %v627
      %vm635 = vcmp.ge.f32.partialorder %v606, %v627
      %v636 = vsel %vm628, %v514, 64
      %v637 = vsel %vm629, %v515, 64
      %v638 = vsel %vm630, %v516, 64
      %v639 = vsel %vm631, %v517, 64
      %v640 = vsel %vm632, %v518, 64
      %v641 = vsel %vm633, %v519, 64
      %v642 = vsel %vm634, %v520, 64
      %v643 = vsel %vm635, %v521, 64
      %v644 = vsel %vm522, %v636, 2147483647
      %v645 = vsel %vm522, %v637, 2147483647
      %v646 = vsel %vm522, %v638, 2147483647
      %v647 = vsel %vm522, %v639, 2147483647
      %v648 = vsel %vm522, %v640, 2147483647
      %vm649 = vcmp.lt.s32.totalorder %v644, %v648
      %v650 = vsel %vm649, %v644, %v648
      %v651 = vsel %vm522, %v641, 2147483647
      %vm652 = vcmp.lt.s32.totalorder %v645, %v651
      %v653 = vsel %vm652, %v645, %v651
      %v654 = vsel %vm522, %v642, 2147483647
      %vm655 = vcmp.lt.s32.totalorder %v646, %v654
      %v656 = vsel %vm655, %v646, %v654
      %v657 = vsel %vm522, %v643, 2147483647
      %vm658 = vcmp.lt.s32.totalorder %v647, %v657
      %v659 = vsel %vm658, %v647, %v657
      %vm660 = vcmp.lt.s32.totalorder %v650, %v653
      %v661 = vsel %vm660, %v650, %v653
      %vm662 = vcmp.lt.s32.totalorder %v656, %v659
      %v663 = vsel %vm662, %v656, %v659
      %vm664 = vcmp.lt.s32.totalorder %v661, %v663
      %v665 = vsel %vm664, %v661, %v663
      %v666 = vrot.slane %v665, 4
      %vm667 = vcmp.lt.s32.totalorder %v665, %v666
      %v668 = vsel %vm667, %v665, %v666
      %v669 = vrot.slane %v668, 2
      %vm670 = vcmp.lt.s32.totalorder %v668, %v669
      %v671 = vsel %vm670, %v668, %v669
      %v672 = vrot.slane %v671, 1
      %vm673 = vcmp.lt.s32.totalorder %v671, %v672
      %v674 = vsel %vm673, %v671, %v672
      %vm675 = vcmp.eq.s32.totalorder %v514, %v674
      %vm676 = vcmp.eq.s32.totalorder %v515, %v674
      %vm677 = vcmp.eq.s32.totalorder %v516, %v674
      %vm678 = vcmp.eq.s32.totalorder %v517, %v674
      %vm679 = vcmp.eq.s32.totalorder %v518, %v674
      %vm680 = vcmp.eq.s32.totalorder %v519, %v674
      %vm681 = vcmp.eq.s32.totalorder %v520, %v674
      %vm682 = vcmp.eq.s32.totalorder %v521, %v674
      %v683 = vsel %vm675, -inf, %v599
      %v684 = vsel %vm676, -inf, %v600
      %v685 = vsel %vm677, -inf, %v601
      %v686 = vsel %vm678, -inf, %v602
      %v687 = vsel %vm679, -inf, %v603
      %v688 = vsel %vm680, -inf, %v604
      %v689 = vsel %vm681, -inf, %v605
      %v690 = vsel %vm682, -inf, %v606
      %v691 = vsel %vm522, %v683, -inf
      %v692 = vsel %vm522, %v684, -inf
      %v693 = vsel %vm522, %v685, -inf
      %v694 = vsel %vm522, %v686, -inf
      %v695 = vsel %vm522, %v687, -inf
      %v696 = vmax.f32 %v691, %v695
      %v697 = vsel %vm522, %v688, -inf
      %v698 = vmax.f32 %v692, %v697
      %v699 = vsel %vm522, %v689, -inf
      %v700 = vmax.f32 %v693, %v699
      %v701 = vsel %vm522, %v690, -inf
      %v702 = vmax.f32 %v694, %v701
      %v703 = vmax.f32 %v696, %v698
      %v704 = vmax.f32 %v700, %v702
      %v705 = vmax.f32 %v703, %v704
      %v706 = vrot.slane %v705, 4
      %v707 = vmax.f32 %v705, %v706
      %v708 = vrot.slane %v707, 2
      %v709 = vmax.f32 %v707, %v708
      %v710 = vrot.slane %v709, 1
      %v711 = vmax.f32 %v709, %v710
      %vm712 = vcmp.ge.f32.partialorder %v683, %v711
      %vm713 = vcmp.ge.f32.partialorder %v684, %v711
      %vm714 = vcmp.ge.f32.partialorder %v685, %v711
      %vm715 = vcmp.ge.f32.partialorder %v686, %v711
      %vm716 = vcmp.ge.f32.partialorder %v687, %v711
      %vm717 = vcmp.ge.f32.partialorder %v688, %v711
      %vm718 = vcmp.ge.f32.partialorder %v689, %v711
      %vm719 = vcmp.ge.f32.partialorder %v690, %v711
      %v720 = vsel %vm712, %v514, 64
      %v721 = vsel %vm713, %v515, 64
      %v722 = vsel %vm714, %v516, 64
      %v723 = vsel %vm715, %v517, 64
      %v724 = vsel %vm716, %v518, 64
      %v725 = vsel %vm717, %v519, 64
      %v726 = vsel %vm718, %v520, 64
      %v727 = vsel %vm719, %v521, 64
      %v728 = vsel %vm522, %v720, 2147483647
      %v729 = vsel %vm522, %v721, 2147483647
      %v730 = vsel %vm522, %v722, 2147483647
      %v731 = vsel %vm522, %v723, 2147483647
      %v732 = vsel %vm522, %v724, 2147483647
      %vm733 = vcmp.lt.s32.totalorder %v728, %v732
      %v734 = vsel %vm733, %v728, %v732
      %v735 = vsel %vm522, %v725, 2147483647
      %vm736 = vcmp.lt.s32.totalorder %v729, %v735
      %v737 = vsel %vm736, %v729, %v735
      %v738 = vsel %vm522, %v726, 2147483647
      %vm739 = vcmp.lt.s32.totalorder %v730, %v738
      %v740 = vsel %vm739, %v730, %v738
      %v741 = vsel %vm522, %v727, 2147483647
      %vm742 = vcmp.lt.s32.totalorder %v731, %v741
      %v743 = vsel %vm742, %v731, %v741
      %vm744 = vcmp.lt.s32.totalorder %v734, %v737
      %v745 = vsel %vm744, %v734, %v737
      %vm746 = vcmp.lt.s32.totalorder %v740, %v743
      %v747 = vsel %vm746, %v740, %v743
      %vm748 = vcmp.lt.s32.totalorder %v745, %v747
      %v749 = vsel %vm748, %v745, %v747
      %v750 = vrot.slane %v749, 4
      %vm751 = vcmp.lt.s32.totalorder %v749, %v750
      %v752 = vsel %vm751, %v749, %v750
      %v753 = vrot.slane %v752, 2
      %vm754 = vcmp.lt.s32.totalorder %v752, %v753
      %v755 = vsel %vm754, %v752, %v753
      %v756 = vrot.slane %v755, 1
      %vm757 = vcmp.lt.s32.totalorder %v755, %v756
      %v758 = vsel %vm757, %v755, %v756
      %vm759 = vcmp.eq.s32.totalorder %v514, %v758
      %vm760 = vcmp.eq.s32.totalorder %v515, %v758
      %vm761 = vcmp.eq.s32.totalorder %v516, %v758
      %vm762 = vcmp.eq.s32.totalorder %v517, %v758
      %vm763 = vcmp.eq.s32.totalorder %v518, %v758
      %vm764 = vcmp.eq.s32.totalorder %v519, %v758
      %vm765 = vcmp.eq.s32.totalorder %v520, %v758
      %vm766 = vcmp.eq.s32.totalorder %v521, %v758
      %v767 = vsel %vm759, -inf, %v683
      %v768 = vsel %vm760, -inf, %v684
      %v769 = vsel %vm761, -inf, %v685
      %v770 = vsel %vm762, -inf, %v686
      %v771 = vsel %vm763, -inf, %v687
      %v772 = vsel %vm764, -inf, %v688
      %v773 = vsel %vm765, -inf, %v689
      %v774 = vsel %vm766, -inf, %v690
      %v775 = vsel %vm522, %v767, -inf
      %v776 = vsel %vm522, %v768, -inf
      %v777 = vsel %vm522, %v769, -inf
      %v778 = vsel %vm522, %v770, -inf
      %v779 = vsel %vm522, %v771, -inf
      %v780 = vmax.f32 %v775, %v779
      %v781 = vsel %vm522, %v772, -inf
      %v782 = vmax.f32 %v776, %v781
      %v783 = vsel %vm522, %v773, -inf
      %v784 = vmax.f32 %v777, %v783
      %v785 = vsel %vm522, %v774, -inf
      %v786 = vmax.f32 %v778, %v785
      %v787 = vmax.f32 %v780, %v782
      %v788 = vmax.f32 %v784, %v786
      %v789 = vmax.f32 %v787, %v788
      %v790 = vrot.slane %v789, 4
      %v791 = vmax.f32 %v789, %v790
      %v792 = vrot.slane %v791, 2
      %v793 = vmax.f32 %v791, %v792
      %v794 = vrot.slane %v793, 1
      %v795 = vmax.f32 %v793, %v794
      %vm796 = vcmp.ge.f32.partialorder %v767, %v795
      %vm797 = vcmp.ge.f32.partialorder %v768, %v795
      %vm798 = vcmp.ge.f32.partialorder %v769, %v795
      %vm799 = vcmp.ge.f32.partialorder %v770, %v795
      %vm800 = vcmp.ge.f32.partialorder %v771, %v795
      %vm801 = vcmp.ge.f32.partialorder %v772, %v795
      %vm802 = vcmp.ge.f32.partialorder %v773, %v795
      %vm803 = vcmp.ge.f32.partialorder %v774, %v795
      %v804 = vsel %vm796, %v514, 64
      %v805 = vsel %vm797, %v515, 64
      %v806 = vsel %vm798, %v516, 64
      %v807 = vsel %vm799, %v517, 64
      %v808 = vsel %vm800, %v518, 64
      %v809 = vsel %vm801, %v519, 64
      %v810 = vsel %vm802, %v520, 64
      %v811 = vsel %vm803, %v521, 64
      %v812 = vsel %vm522, %v804, 2147483647
      %v813 = vsel %vm522, %v805, 2147483647
      %v814 = vsel %vm522, %v806, 2147483647
      %v815 = vsel %vm522, %v807, 2147483647
      %v816 = vsel %vm522, %v808, 2147483647
      %vm817 = vcmp.lt.s32.totalorder %v812, %v816
      %v818 = vsel %vm817, %v812, %v816
      %v819 = vsel %vm522, %v809, 2147483647
      %vm820 = vcmp.lt.s32.totalorder %v813, %v819
      %v821 = vsel %vm820, %v813, %v819
      %v822 = vsel %vm522, %v810, 2147483647
      %vm823 = vcmp.lt.s32.totalorder %v814, %v822
      %v824 = vsel %vm823, %v814, %v822
      %v825 = vsel %vm522, %v811, 2147483647
      %vm826 = vcmp.lt.s32.totalorder %v815, %v825
      %v827 = vsel %vm826, %v815, %v825
      %vm828 = vcmp.lt.s32.totalorder %v818, %v821
      %v829 = vsel %vm828, %v818, %v821
      %vm830 = vcmp.lt.s32.totalorder %v824, %v827
      %v831 = vsel %vm830, %v824, %v827
      %vm832 = vcmp.lt.s32.totalorder %v829, %v831
      %v833 = vsel %vm832, %v829, %v831
      %v834 = vrot.slane %v833, 4
      %vm835 = vcmp.lt.s32.totalorder %v833, %v834
      %v836 = vsel %vm835, %v833, %v834
      %v837 = vrot.slane %v836, 2
      %vm838 = vcmp.lt.s32.totalorder %v836, %v837
      %v839 = vsel %vm838, %v836, %v837
      %v840 = vrot.slane %v839, 1
      %vm841 = vcmp.lt.s32.totalorder %v839, %v840
      %v842 = vsel %vm841, %v839, %v840
      %vm843 = vcmp.eq.s32.totalorder %v514, %v842
      %vm844 = vcmp.eq.s32.totalorder %v515, %v842
      %vm845 = vcmp.eq.s32.totalorder %v516, %v842
      %vm846 = vcmp.eq.s32.totalorder %v517, %v842
      %vm847 = vcmp.eq.s32.totalorder %v518, %v842
      %vm848 = vcmp.eq.s32.totalorder %v519, %v842
      %vm849 = vcmp.eq.s32.totalorder %v520, %v842
      %vm850 = vcmp.eq.s32.totalorder %v521, %v842
      %v851 = vsel %vm843, -inf, %v767
      %v852 = vsel %vm844, -inf, %v768
      %v853 = vsel %vm845, -inf, %v769
      %v854 = vsel %vm846, -inf, %v770
      %v855 = vsel %vm847, -inf, %v771
      %v856 = vsel %vm848, -inf, %v772
      %v857 = vsel %vm849, -inf, %v773
      %v858 = vsel %vm850, -inf, %v774
      %v859 = vsel %vm522, %v851, -inf
      %v860 = vsel %vm522, %v852, -inf
      %v861 = vsel %vm522, %v853, -inf
      %v862 = vsel %vm522, %v854, -inf
      %v863 = vsel %vm522, %v855, -inf
      %v864 = vmax.f32 %v859, %v863
      %v865 = vsel %vm522, %v856, -inf
      %v866 = vmax.f32 %v860, %v865
      %v867 = vsel %vm522, %v857, -inf
      %v868 = vmax.f32 %v861, %v867
      %v869 = vsel %vm522, %v858, -inf
      %v870 = vmax.f32 %v862, %v869
      %v871 = vmax.f32 %v864, %v866
      %v872 = vmax.f32 %v868, %v870
      %v873 = vmax.f32 %v871, %v872
      %v874 = vrot.slane %v873, 4
      %v875 = vmax.f32 %v873, %v874
      %v876 = vrot.slane %v875, 2
      %v877 = vmax.f32 %v875, %v876
      %v878 = vrot.slane %v877, 1
      %v879 = vmax.f32 %v877, %v878
      %vm880 = vcmp.ge.f32.partialorder %v851, %v879
      %vm881 = vcmp.ge.f32.partialorder %v852, %v879
      %vm882 = vcmp.ge.f32.partialorder %v853, %v879
      %vm883 = vcmp.ge.f32.partialorder %v854, %v879
      %vm884 = vcmp.ge.f32.partialorder %v855, %v879
      %vm885 = vcmp.ge.f32.partialorder %v856, %v879
      %vm886 = vcmp.ge.f32.partialorder %v857, %v879
      %vm887 = vcmp.ge.f32.partialorder %v858, %v879
      %v888 = vsel %vm880, %v514, 64
      %v889 = vsel %vm881, %v515, 64
      %v890 = vsel %vm882, %v516, 64
      %v891 = vsel %vm883, %v517, 64
      %v892 = vsel %vm884, %v518, 64
      %v893 = vsel %vm885, %v519, 64
      %v894 = vsel %vm886, %v520, 64
      %v895 = vsel %vm887, %v521, 64
      %v896 = vsel %vm522, %v888, 2147483647
      %v897 = vsel %vm522, %v889, 2147483647
      %v898 = vsel %vm522, %v890, 2147483647
      %v899 = vsel %vm522, %v891, 2147483647
      %v900 = vsel %vm522, %v892, 2147483647
      %vm901 = vcmp.lt.s32.totalorder %v896, %v900
      %v902 = vsel %vm901, %v896, %v900
      %v903 = vsel %vm522, %v893, 2147483647
      %vm904 = vcmp.lt.s32.totalorder %v897, %v903
      %v905 = vsel %vm904, %v897, %v903
      %v906 = vsel %vm522, %v894, 2147483647
      %vm907 = vcmp.lt.s32.totalorder %v898, %v906
      %v908 = vsel %vm907, %v898, %v906
      %v909 = vsel %vm522, %v895, 2147483647
      %vm910 = vcmp.lt.s32.totalorder %v899, %v909
      %v911 = vsel %vm910, %v899, %v909
      %vm912 = vcmp.lt.s32.totalorder %v902, %v905
      %v913 = vsel %vm912, %v902, %v905
      %vm914 = vcmp.lt.s32.totalorder %v908, %v911
      %v915 = vsel %vm914, %v908, %v911
      %vm916 = vcmp.lt.s32.totalorder %v913, %v915
      %v917 = vsel %vm916, %v913, %v915
      %v918 = vrot.slane %v917, 4
      %vm919 = vcmp.lt.s32.totalorder %v917, %v918
      %v920 = vsel %vm919, %v917, %v918
      %v921 = vrot.slane %v920, 2
      %vm922 = vcmp.lt.s32.totalorder %v920, %v921
      %v923 = vsel %vm922, %v920, %v921
      %v924 = vrot.slane %v923, 1
      %vm925 = vcmp.lt.s32.totalorder %v923, %v924
      %v926 = vsel %vm925, %v923, %v924
      %vm927 = vcmp.eq.s32.totalorder %v514, %v926
      %vm928 = vcmp.eq.s32.totalorder %v515, %v926
      %vm929 = vcmp.eq.s32.totalorder %v516, %v926
      %vm930 = vcmp.eq.s32.totalorder %v517, %v926
      %vm931 = vcmp.eq.s32.totalorder %v518, %v926
      %vm932 = vcmp.eq.s32.totalorder %v519, %v926
      %vm933 = vcmp.eq.s32.totalorder %v520, %v926
      %vm934 = vcmp.eq.s32.totalorder %v521, %v926
      %v935 = vsel %vm927, -inf, %v851
      %v936 = vsel %vm928, -inf, %v852
      %v937 = vsel %vm929, -inf, %v853
      %v938 = vsel %vm930, -inf, %v854
      %v939 = vsel %vm931, -inf, %v855
      %v940 = vsel %vm932, -inf, %v856
      %v941 = vsel %vm933, -inf, %v857
      %v942 = vsel %vm934, -inf, %v858
      %v943 = vsel %vm522, %v935, -inf
      %v944 = vsel %vm522, %v936, -inf
      %v945 = vsel %vm522, %v937, -inf
      %v946 = vsel %vm522, %v938, -inf
      %v947 = vsel %vm522, %v939, -inf
      %v948 = vmax.f32 %v943, %v947
      %v949 = vsel %vm522, %v940, -inf
      %v950 = vmax.f32 %v944, %v949
      %v951 = vsel %vm522, %v941, -inf
      %v952 = vmax.f32 %v945, %v951
      %v953 = vsel %vm522, %v942, -inf
      %v954 = vmax.f32 %v946, %v953
      %v955 = vmax.f32 %v948, %v950
      %v956 = vmax.f32 %v952, %v954
      %v957 = vmax.f32 %v955, %v956
      %v958 = vrot.slane %v957, 4
      %v959 = vmax.f32 %v957, %v958
      %v960 = vrot.slane %v959, 2
      %v961 = vmax.f32 %v959, %v960
      %v962 = vrot.slane %v961, 1
      %v963 = vmax.f32 %v961, %v962
      %vm964 = vcmp.ge.f32.partialorder %v935, %v963
      %vm965 = vcmp.ge.f32.partialorder %v936, %v963
      %vm966 = vcmp.ge.f32.partialorder %v937, %v963
      %vm967 = vcmp.ge.f32.partialorder %v938, %v963
      %vm968 = vcmp.ge.f32.partialorder %v939, %v963
      %vm969 = vcmp.ge.f32.partialorder %v940, %v963
      %vm970 = vcmp.ge.f32.partialorder %v941, %v963
      %vm971 = vcmp.ge.f32.partialorder %v942, %v963
      %v972 = vsel %vm964, %v514, 64
      %v973 = vsel %vm965, %v515, 64
      %v974 = vsel %vm966, %v516, 64
      %v975 = vsel %vm967, %v517, 64
      %v976 = vsel %vm968, %v518, 64
      %v977 = vsel %vm969, %v519, 64
      %v978 = vsel %vm970, %v520, 64
      %v979 = vsel %vm971, %v521, 64
      %v980 = vsel %vm522, %v972, 2147483647
      %v981 = vsel %vm522, %v973, 2147483647
      %v982 = vsel %vm522, %v974, 2147483647
      %v983 = vsel %vm522, %v975, 2147483647
      %v984 = vsel %vm522, %v976, 2147483647
      %vm985 = vcmp.lt.s32.totalorder %v980, %v984
      %v986 = vsel %vm985, %v980, %v984
      %v987 = vsel %vm522, %v977, 2147483647
      %vm988 = vcmp.lt.s32.totalorder %v981, %v987
      %v989 = vsel %vm988, %v981, %v987
      %v990 = vsel %vm522, %v978, 2147483647
      %vm991 = vcmp.lt.s32.totalorder %v982, %v990
      %v992 = vsel %vm991, %v982, %v990
      %v993 = vsel %vm522, %v979, 2147483647
      %vm994 = vcmp.lt.s32.totalorder %v983, %v993
      %v995 = vsel %vm994, %v983, %v993
      %vm996 = vcmp.lt.s32.totalorder %v986, %v989
      %v997 = vsel %vm996, %v986, %v989
      %vm998 = vcmp.lt.s32.totalorder %v992, %v995
      %v999 = vsel %vm998, %v992, %v995
      %vm1000 = vcmp.lt.s32.totalorder %v997, %v999
      %v1001 = vsel %vm1000, %v997, %v999
      %v1002 = vrot.slane %v1001, 4
      %vm1003 = vcmp.lt.s32.totalorder %v1001, %v1002
      %v1004 = vsel %vm1003, %v1001, %v1002
      %v1005 = vrot.slane %v1004, 2
      %vm1006 = vcmp.lt.s32.totalorder %v1004, %v1005
      %v1007 = vsel %vm1006, %v1004, %v1005
      %v1008 = vrot.slane %v1007, 1
      %vm1009 = vcmp.lt.s32.totalorder %v1007, %v1008
      %v1010 = vsel %vm1009, %v1007, %v1008
      %vm1011 = vcmp.eq.s32.totalorder %v514, %v1010
      %vm1012 = vcmp.eq.s32.totalorder %v515, %v1010
      %vm1013 = vcmp.eq.s32.totalorder %v516, %v1010
      %vm1014 = vcmp.eq.s32.totalorder %v517, %v1010
      %vm1015 = vcmp.eq.s32.totalorder %v518, %v1010
      %vm1016 = vcmp.eq.s32.totalorder %v519, %v1010
      %vm1017 = vcmp.eq.s32.totalorder %v520, %v1010
      %vm1018 = vcmp.eq.s32.totalorder %v521, %v1010
      %v1019 = vsel %vm1011, -inf, %v935
      %v1020 = vsel %vm1012, -inf, %v936
      %v1021 = vsel %vm1013, -inf, %v937
      %v1022 = vsel %vm1014, -inf, %v938
      %v1023 = vsel %vm1015, -inf, %v939
      %v1024 = vsel %vm1016, -inf, %v940
      %v1025 = vsel %vm1017, -inf, %v941
      %v1026 = vsel %vm1018, -inf, %v942
      %v1027 = vsel %vm522, %v1019, -inf
      %v1028 = vsel %vm522, %v1020, -inf
      %v1029 = vsel %vm522, %v1021, -inf
      %v1030 = vsel %vm522, %v1022, -inf
      %v1031 = vsel %vm522, %v1023, -inf
      %v1032 = vmax.f32 %v1027, %v1031
      %v1033 = vsel %vm522, %v1024, -inf
      %v1034 = vmax.f32 %v1028, %v1033
      %v1035 = vsel %vm522, %v1025, -inf
      %v1036 = vmax.f32 %v1029, %v1035
      %v1037 = vsel %vm522, %v1026, -inf
      %v1038 = vmax.f32 %v1030, %v1037
      %v1039 = vmax.f32 %v1032, %v1034
      %v1040 = vmax.f32 %v1036, %v1038
      %v1041 = vmax.f32 %v1039, %v1040
      %v1042 = vrot.slane %v1041, 4
      %v1043 = vmax.f32 %v1041, %v1042
      %v1044 = vrot.slane %v1043, 2
      %v1045 = vmax.f32 %v1043, %v1044
      %v1046 = vrot.slane %v1045, 1
      %v1047 = vmax.f32 %v1045, %v1046
      %vm1048 = vcmp.ge.f32.partialorder %v1019, %v1047
      %vm1049 = vcmp.ge.f32.partialorder %v1020, %v1047
      %vm1050 = vcmp.ge.f32.partialorder %v1021, %v1047
      %vm1051 = vcmp.ge.f32.partialorder %v1022, %v1047
      %vm1052 = vcmp.ge.f32.partialorder %v1023, %v1047
      %vm1053 = vcmp.ge.f32.partialorder %v1024, %v1047
      %vm1054 = vcmp.ge.f32.partialorder %v1025, %v1047
      %vm1055 = vcmp.ge.f32.partialorder %v1026, %v1047
      %v1056 = vsel %vm1048, %v514, 64
      %v1057 = vsel %vm1049, %v515, 64
      %v1058 = vsel %vm1050, %v516, 64
      %v1059 = vsel %vm1051, %v517, 64
      %v1060 = vsel %vm1052, %v518, 64
      %v1061 = vsel %vm1053, %v519, 64
      %v1062 = vsel %vm1054, %v520, 64
      %v1063 = vsel %vm1055, %v521, 64
      %v1064 = vsel %vm522, %v1056, 2147483647
      %v1065 = vsel %vm522, %v1057, 2147483647
      %v1066 = vsel %vm522, %v1058, 2147483647
      %v1067 = vsel %vm522, %v1059, 2147483647
      %v1068 = vsel %vm522, %v1060, 2147483647
      %vm1069 = vcmp.lt.s32.totalorder %v1064, %v1068
      %v1070 = vsel %vm1069, %v1064, %v1068
      %v1071 = vsel %vm522, %v1061, 2147483647
      %vm1072 = vcmp.lt.s32.totalorder %v1065, %v1071
      %v1073 = vsel %vm1072, %v1065, %v1071
      %v1074 = vsel %vm522, %v1062, 2147483647
      %vm1075 = vcmp.lt.s32.totalorder %v1066, %v1074
      %v1076 = vsel %vm1075, %v1066, %v1074
      %v1077 = vsel %vm522, %v1063, 2147483647
      %vm1078 = vcmp.lt.s32.totalorder %v1067, %v1077
      %v1079 = vsel %vm1078, %v1067, %v1077
      %vm1080 = vcmp.lt.s32.totalorder %v1070, %v1073
      %v1081 = vsel %vm1080, %v1070, %v1073
      %vm1082 = vcmp.lt.s32.totalorder %v1076, %v1079
      %v1083 = vsel %vm1082, %v1076, %v1079
      %vm1084 = vcmp.lt.s32.totalorder %v1081, %v1083
      %v1085 = vsel %vm1084, %v1081, %v1083
      %v1086 = vrot.slane %v1085, 4
      %vm1087 = vcmp.lt.s32.totalorder %v1085, %v1086
      %v1088 = vsel %vm1087, %v1085, %v1086
      %v1089 = vrot.slane %v1088, 2
      %vm1090 = vcmp.lt.s32.totalorder %v1088, %v1089
      %v1091 = vsel %vm1090, %v1088, %v1089
      %v1092 = vrot.slane %v1091, 1
      %vm1093 = vcmp.lt.s32.totalorder %v1091, %v1092
      %v1094 = vsel %vm1093, %v1091, %v1092
      %vm1095 = vcmp.eq.s32.totalorder %v514, %v1094
      %vm1096 = vcmp.eq.s32.totalorder %v515, %v1094
      %vm1097 = vcmp.eq.s32.totalorder %v516, %v1094
      %vm1098 = vcmp.eq.s32.totalorder %v517, %v1094
      %vm1099 = vcmp.eq.s32.totalorder %v518, %v1094
      %vm1100 = vcmp.eq.s32.totalorder %v519, %v1094
      %vm1101 = vcmp.eq.s32.totalorder %v520, %v1094
      %vm1102 = vcmp.eq.s32.totalorder %v521, %v1094
      %v1103 = vsel %vm1095, -inf, %v1019
      %v1104 = vsel %vm1096, -inf, %v1020
      %v1105 = vsel %vm1097, -inf, %v1021
      %v1106 = vsel %vm1098, -inf, %v1022
      %v1107 = vsel %vm1099, -inf, %v1023
      %v1108 = vsel %vm1100, -inf, %v1024
      %v1109 = vsel %vm1101, -inf, %v1025
      %v1110 = vsel %vm1102, -inf, %v1026
      %v1111 = vsel %vm522, %v1103, -inf
      %v1112 = vsel %vm522, %v1104, -inf
      %v1113 = vsel %vm522, %v1105, -inf
      %v1114 = vsel %vm522, %v1106, -inf
      %v1115 = vsel %vm522, %v1107, -inf
      %v1116 = vmax.f32 %v1111, %v1115
      %v1117 = vsel %vm522, %v1108, -inf
      %v1118 = vmax.f32 %v1112, %v1117
      %v1119 = vsel %vm522, %v1109, -inf
      %v1120 = vmax.f32 %v1113, %v1119
      %v1121 = vsel %vm522, %v1110, -inf
      %v1122 = vmax.f32 %v1114, %v1121
      %v1123 = vmax.f32 %v1116, %v1118
      %v1124 = vmax.f32 %v1120, %v1122
      %v1125 = vmax.f32 %v1123, %v1124
      %v1126 = vrot.slane %v1125, 4
      %v1127 = vmax.f32 %v1125, %v1126
      %v1128 = vrot.slane %v1127, 2
      %v1129 = vmax.f32 %v1127, %v1128
      %v1130 = vrot.slane %v1129, 1
      %v1131 = vmax.f32 %v1129, %v1130
      %vm1132 = vcmp.ge.f32.partialorder %v1103, %v1131
      %vm1133 = vcmp.ge.f32.partialorder %v1104, %v1131
      %vm1134 = vcmp.ge.f32.partialorder %v1105, %v1131
      %vm1135 = vcmp.ge.f32.partialorder %v1106, %v1131
      %vm1136 = vcmp.ge.f32.partialorder %v1107, %v1131
      %vm1137 = vcmp.ge.f32.partialorder %v1108, %v1131
      %vm1138 = vcmp.ge.f32.partialorder %v1109, %v1131
      %vm1139 = vcmp.ge.f32.partialorder %v1110, %v1131
      %v1140 = vsel %vm1132, %v514, 64
      %v1141 = vsel %vm1133, %v515, 64
      %v1142 = vsel %vm1134, %v516, 64
      %v1143 = vsel %vm1135, %v517, 64
      %v1144 = vsel %vm1136, %v518, 64
      %v1145 = vsel %vm1137, %v519, 64
      %v1146 = vsel %vm1138, %v520, 64
      %v1147 = vsel %vm1139, %v521, 64
      %v1148 = vsel %vm522, %v1140, 2147483647
      %v1149 = vsel %vm522, %v1141, 2147483647
      %v1150 = vsel %vm522, %v1142, 2147483647
      %v1151 = vsel %vm522, %v1143, 2147483647
      %v1152 = vsel %vm522, %v1144, 2147483647
      %vm1153 = vcmp.lt.s32.totalorder %v1148, %v1152
      %v1154 = vsel %vm1153, %v1148, %v1152
      %v1155 = vsel %vm522, %v1145, 2147483647
      %vm1156 = vcmp.lt.s32.totalorder %v1149, %v1155
      %v1157 = vsel %vm1156, %v1149, %v1155
      %v1158 = vsel %vm522, %v1146, 2147483647
      %vm1159 = vcmp.lt.s32.totalorder %v1150, %v1158
      %v1160 = vsel %vm1159, %v1150, %v1158
      %v1161 = vsel %vm522, %v1147, 2147483647
      %vm1162 = vcmp.lt.s32.totalorder %v1151, %v1161
      %v1163 = vsel %vm1162, %v1151, %v1161
      %vm1164 = vcmp.lt.s32.totalorder %v1154, %v1157
      %v1165 = vsel %vm1164, %v1154, %v1157
      %vm1166 = vcmp.lt.s32.totalorder %v1160, %v1163
      %v1167 = vsel %vm1166, %v1160, %v1163
      %vm1168 = vcmp.lt.s32.totalorder %v1165, %v1167
      %v1169 = vsel %vm1168, %v1165, %v1167
      %v1170 = vrot.slane %v1169, 4
      %vm1171 = vcmp.lt.s32.totalorder %v1169, %v1170
      %v1172 = vsel %vm1171, %v1169, %v1170
      %v1173 = vrot.slane %v1172, 2
      %vm1174 = vcmp.lt.s32.totalorder %v1172, %v1173
      %v1175 = vsel %vm1174, %v1172, %v1173
      %v1176 = vrot.slane %v1175, 1
      %vm1177 = vcmp.lt.s32.totalorder %v1175, %v1176
      %v1178 = vsel %vm1177, %v1175, %v1176
      %vm1179 = vcmp.eq.s32.totalorder %v514, %v1178
      %vm1180 = vcmp.eq.s32.totalorder %v515, %v1178
      %vm1181 = vcmp.eq.s32.totalorder %v516, %v1178
      %vm1182 = vcmp.eq.s32.totalorder %v517, %v1178
      %vm1183 = vcmp.eq.s32.totalorder %v518, %v1178
      %vm1184 = vcmp.eq.s32.totalorder %v519, %v1178
      %vm1185 = vcmp.eq.s32.totalorder %v520, %v1178
      %vm1186 = vcmp.eq.s32.totalorder %v521, %v1178
      %v1187 = vsel %vm1179, -inf, %v1103
      %v1188 = vsel %vm1180, -inf, %v1104
      %v1189 = vsel %vm1181, -inf, %v1105
      %v1190 = vsel %vm1182, -inf, %v1106
      %v1191 = vsel %vm1183, -inf, %v1107
      %v1192 = vsel %vm1184, -inf, %v1108
      %v1193 = vsel %vm1185, -inf, %v1109
      %v1194 = vsel %vm1186, -inf, %v1110
      %v1195 = vsel %vm522, %v1187, -inf
      %v1196 = vsel %vm522, %v1188, -inf
      %v1197 = vsel %vm522, %v1189, -inf
      %v1198 = vsel %vm522, %v1190, -inf
      %v1199 = vsel %vm522, %v1191, -inf
      %v1200 = vmax.f32 %v1195, %v1199
      %v1201 = vsel %vm522, %v1192, -inf
      %v1202 = vmax.f32 %v1196, %v1201
      %v1203 = vsel %vm522, %v1193, -inf
      %v1204 = vmax.f32 %v1197, %v1203
      %v1205 = vsel %vm522, %v1194, -inf
      %v1206 = vmax.f32 %v1198, %v1205
      %v1207 = vmax.f32 %v1200, %v1202
      %v1208 = vmax.f32 %v1204, %v1206
      %v1209 = vmax.f32 %v1207, %v1208
      %v1210 = vrot.slane %v1209, 4
      %v1211 = vmax.f32 %v1209, %v1210
      %v1212 = vrot.slane %v1211, 2
      %v1213 = vmax.f32 %v1211, %v1212
      %v1214 = vrot.slane %v1213, 1
      %v1215 = vmax.f32 %v1213, %v1214
      %vm1216 = vcmp.ge.f32.partialorder %v1187, %v1215
      %vm1217 = vcmp.ge.f32.partialorder %v1188, %v1215
      %vm1218 = vcmp.ge.f32.partialorder %v1189, %v1215
      %vm1219 = vcmp.ge.f32.partialorder %v1190, %v1215
      %vm1220 = vcmp.ge.f32.partialorder %v1191, %v1215
      %vm1221 = vcmp.ge.f32.partialorder %v1192, %v1215
      %vm1222 = vcmp.ge.f32.partialorder %v1193, %v1215
      %vm1223 = vcmp.ge.f32.partialorder %v1194, %v1215
      %v1224 = vsel %vm1216, %v514, 64
      %v1225 = vsel %vm1217, %v515, 64
      %v1226 = vsel %vm1218, %v516, 64
      %v1227 = vsel %vm1219, %v517, 64
      %v1228 = vsel %vm1220, %v518, 64
      %v1229 = vsel %vm1221, %v519, 64
      %v1230 = vsel %vm1222, %v520, 64
      %v1231 = vsel %vm1223, %v521, 64
      %v1232 = vsel %vm522, %v1224, 2147483647
      %v1233 = vsel %vm522, %v1225, 2147483647
      %v1234 = vsel %vm522, %v1226, 2147483647
      %v1235 = vsel %vm522, %v1227, 2147483647
      %v1236 = vsel %vm522, %v1228, 2147483647
      %vm1237 = vcmp.lt.s32.totalorder %v1232, %v1236
      %v1238 = vsel %vm1237, %v1232, %v1236
      %v1239 = vsel %vm522, %v1229, 2147483647
      %vm1240 = vcmp.lt.s32.totalorder %v1233, %v1239
      %v1241 = vsel %vm1240, %v1233, %v1239
      %v1242 = vsel %vm522, %v1230, 2147483647
      %vm1243 = vcmp.lt.s32.totalorder %v1234, %v1242
      %v1244 = vsel %vm1243, %v1234, %v1242
      %v1245 = vsel %vm522, %v1231, 2147483647
      %vm1246 = vcmp.lt.s32.totalorder %v1235, %v1245
      %v1247 = vsel %vm1246, %v1235, %v1245
      %vm1248 = vcmp.lt.s32.totalorder %v1238, %v1241
      %v1249 = vsel %vm1248, %v1238, %v1241
      %vm1250 = vcmp.lt.s32.totalorder %v1244, %v1247
      %v1251 = vsel %vm1250, %v1244, %v1247
      %vm1252 = vcmp.lt.s32.totalorder %v1249, %v1251
      %v1253 = vsel %vm1252, %v1249, %v1251
      %v1254 = vrot.slane %v1253, 4
      %vm1255 = vcmp.lt.s32.totalorder %v1253, %v1254
      %v1256 = vsel %vm1255, %v1253, %v1254
      %v1257 = vrot.slane %v1256, 2
      %vm1258 = vcmp.lt.s32.totalorder %v1256, %v1257
      %v1259 = vsel %vm1258, %v1256, %v1257
      %v1260 = vrot.slane %v1259, 1
      %vm1261 = vcmp.lt.s32.totalorder %v1259, %v1260
      %v1262 = vsel %vm1261, %v1259, %v1260
      %vm1263 = vcmp.eq.s32.totalorder %v514, %v1262
      %vm1264 = vcmp.eq.s32.totalorder %v515, %v1262
      %vm1265 = vcmp.eq.s32.totalorder %v516, %v1262
      %vm1266 = vcmp.eq.s32.totalorder %v517, %v1262
      %vm1267 = vcmp.eq.s32.totalorder %v518, %v1262
      %vm1268 = vcmp.eq.s32.totalorder %v519, %v1262
      %vm1269 = vcmp.eq.s32.totalorder %v520, %v1262
      %vm1270 = vcmp.eq.s32.totalorder %v521, %v1262
      %v1271 = vsel %vm1263, -inf, %v1187
      %v1272 = vsel %vm1264, -inf, %v1188
      %v1273 = vsel %vm1265, -inf, %v1189
      %v1274 = vsel %vm1266, -inf, %v1190
      %v1275 = vsel %vm1267, -inf, %v1191
      %v1276 = vsel %vm1268, -inf, %v1192
      %v1277 = vsel %vm1269, -inf, %v1193
      %v1278 = vsel %vm1270, -inf, %v1194
      %v1279 = vsel %vm522, %v1271, -inf
      %v1280 = vsel %vm522, %v1272, -inf
      %v1281 = vsel %vm522, %v1273, -inf
      %v1282 = vsel %vm522, %v1274, -inf
      %v1283 = vsel %vm522, %v1275, -inf
      %v1284 = vmax.f32 %v1279, %v1283
      %v1285 = vsel %vm522, %v1276, -inf
      %v1286 = vmax.f32 %v1280, %v1285
      %v1287 = vsel %vm522, %v1277, -inf
      %v1288 = vmax.f32 %v1281, %v1287
      %v1289 = vsel %vm522, %v1278, -inf
      %v1290 = vmax.f32 %v1282, %v1289
      %v1291 = vmax.f32 %v1284, %v1286
      %v1292 = vmax.f32 %v1288, %v1290
      %v1293 = vmax.f32 %v1291, %v1292
      %v1294 = vrot.slane %v1293, 4
      %v1295 = vmax.f32 %v1293, %v1294
      %v1296 = vrot.slane %v1295, 2
      %v1297 = vmax.f32 %v1295, %v1296
      %v1298 = vrot.slane %v1297, 1
      %v1299 = vmax.f32 %v1297, %v1298
      %vm1300 = vcmp.ge.f32.partialorder %v1271, %v1299
      %vm1301 = vcmp.ge.f32.partialorder %v1272, %v1299
      %vm1302 = vcmp.ge.f32.partialorder %v1273, %v1299
      %vm1303 = vcmp.ge.f32.partialorder %v1274, %v1299
      %vm1304 = vcmp.ge.f32.partialorder %v1275, %v1299
      %vm1305 = vcmp.ge.f32.partialorder %v1276, %v1299
      %vm1306 = vcmp.ge.f32.partialorder %v1277, %v1299
      %vm1307 = vcmp.ge.f32.partialorder %v1278, %v1299
      %v1308 = vsel %vm1300, %v514, 64
      %v1309 = vsel %vm1301, %v515, 64
      %v1310 = vsel %vm1302, %v516, 64
      %v1311 = vsel %vm1303, %v517, 64
      %v1312 = vsel %vm1304, %v518, 64
      %v1313 = vsel %vm1305, %v519, 64
      %v1314 = vsel %vm1306, %v520, 64
      %v1315 = vsel %vm1307, %v521, 64
      %v1316 = vsel %vm522, %v1308, 2147483647
      %v1317 = vsel %vm522, %v1309, 2147483647
      %v1318 = vsel %vm522, %v1310, 2147483647
      %v1319 = vsel %vm522, %v1311, 2147483647
      %v1320 = vsel %vm522, %v1312, 2147483647
      %vm1321 = vcmp.lt.s32.totalorder %v1316, %v1320
      %v1322 = vsel %vm1321, %v1316, %v1320
      %v1323 = vsel %vm522, %v1313, 2147483647
      %vm1324 = vcmp.lt.s32.totalorder %v1317, %v1323
      %v1325 = vsel %vm1324, %v1317, %v1323
      %v1326 = vsel %vm522, %v1314, 2147483647
      %vm1327 = vcmp.lt.s32.totalorder %v1318, %v1326
      %v1328 = vsel %vm1327, %v1318, %v1326
      %v1329 = vsel %vm522, %v1315, 2147483647
      %vm1330 = vcmp.lt.s32.totalorder %v1319, %v1329
      %v1331 = vsel %vm1330, %v1319, %v1329
      %vm1332 = vcmp.lt.s32.totalorder %v1322, %v1325
      %v1333 = vsel %vm1332, %v1322, %v1325
      %vm1334 = vcmp.lt.s32.totalorder %v1328, %v1331
      %v1335 = vsel %vm1334, %v1328, %v1331
      %vm1336 = vcmp.lt.s32.totalorder %v1333, %v1335
      %v1337 = vsel %vm1336, %v1333, %v1335
      %v1338 = vrot.slane %v1337, 4
      %vm1339 = vcmp.lt.s32.totalorder %v1337, %v1338
      %v1340 = vsel %vm1339, %v1337, %v1338
      %v1341 = vrot.slane %v1340, 2
      %vm1342 = vcmp.lt.s32.totalorder %v1340, %v1341
      %v1343 = vsel %vm1342, %v1340, %v1341
      %v1344 = vrot.slane %v1343, 1
      %vm1345 = vcmp.lt.s32.totalorder %v1343, %v1344
      %v1346 = vsel %vm1345, %v1343, %v1344
      %vm1347 = vcmp.eq.s32.totalorder %v514, %v1346
      %vm1348 = vcmp.eq.s32.totalorder %v515, %v1346
      %vm1349 = vcmp.eq.s32.totalorder %v516, %v1346
      %vm1350 = vcmp.eq.s32.totalorder %v517, %v1346
      %vm1351 = vcmp.eq.s32.totalorder %v518, %v1346
      %vm1352 = vcmp.eq.s32.totalorder %v519, %v1346
      %vm1353 = vcmp.eq.s32.totalorder %v520, %v1346
      %vm1354 = vcmp.eq.s32.totalorder %v521, %v1346
      %v1355 = vsel %vm1347, -inf, %v1271
      %v1356 = vsel %vm1348, -inf, %v1272
      %v1357 = vsel %vm1349, -inf, %v1273
      %v1358 = vsel %vm1350, -inf, %v1274
      %v1359 = vsel %vm1351, -inf, %v1275
      %v1360 = vsel %vm1352, -inf, %v1276
      %v1361 = vsel %vm1353, -inf, %v1277
      %v1362 = vsel %vm1354, -inf, %v1278
      %v1363 = vsel %vm522, %v1355, -inf
      %v1364 = vsel %vm522, %v1356, -inf
      %v1365 = vsel %vm522, %v1357, -inf
      %v1366 = vsel %vm522, %v1358, -inf
      %v1367 = vsel %vm522, %v1359, -inf
      %v1368 = vmax.f32 %v1363, %v1367
      %v1369 = vsel %vm522, %v1360, -inf
      %v1370 = vmax.f32 %v1364, %v1369
      %v1371 = vsel %vm522, %v1361, -inf
      %v1372 = vmax.f32 %v1365, %v1371
      %v1373 = vsel %vm522, %v1362, -inf
      %v1374 = vmax.f32 %v1366, %v1373
      %v1375 = vmax.f32 %v1368, %v1370
      %v1376 = vmax.f32 %v1372, %v1374
      %v1377 = vmax.f32 %v1375, %v1376
      %v1378 = vrot.slane %v1377, 4
      %v1379 = vmax.f32 %v1377, %v1378
      %v1380 = vrot.slane %v1379, 2
      %v1381 = vmax.f32 %v1379, %v1380
      %v1382 = vrot.slane %v1381, 1
      %v1383 = vmax.f32 %v1381, %v1382
      %vm1384 = vcmp.ge.f32.partialorder %v1355, %v1383
      %vm1385 = vcmp.ge.f32.partialorder %v1356, %v1383
      %vm1386 = vcmp.ge.f32.partialorder %v1357, %v1383
      %vm1387 = vcmp.ge.f32.partialorder %v1358, %v1383
      %vm1388 = vcmp.ge.f32.partialorder %v1359, %v1383
      %vm1389 = vcmp.ge.f32.partialorder %v1360, %v1383
      %vm1390 = vcmp.ge.f32.partialorder %v1361, %v1383
      %vm1391 = vcmp.ge.f32.partialorder %v1362, %v1383
      %v1392 = vsel %vm1384, %v514, 64
      %v1393 = vsel %vm1385, %v515, 64
      %v1394 = vsel %vm1386, %v516, 64
      %v1395 = vsel %vm1387, %v517, 64
      %v1396 = vsel %vm1388, %v518, 64
      %v1397 = vsel %vm1389, %v519, 64
      %v1398 = vsel %vm1390, %v520, 64
      %v1399 = vsel %vm1391, %v521, 64
      %v1400 = vsel %vm522, %v1392, 2147483647
      %v1401 = vsel %vm522, %v1393, 2147483647
      %v1402 = vsel %vm522, %v1394, 2147483647
      %v1403 = vsel %vm522, %v1395, 2147483647
      %v1404 = vsel %vm522, %v1396, 2147483647
      %vm1405 = vcmp.lt.s32.totalorder %v1400, %v1404
      %v1406 = vsel %vm1405, %v1400, %v1404
      %v1407 = vsel %vm522, %v1397, 2147483647
      %vm1408 = vcmp.lt.s32.totalorder %v1401, %v1407
      %v1409 = vsel %vm1408, %v1401, %v1407
      %v1410 = vsel %vm522, %v1398, 2147483647
      %vm1411 = vcmp.lt.s32.totalorder %v1402, %v1410
      %v1412 = vsel %vm1411, %v1402, %v1410
      %v1413 = vsel %vm522, %v1399, 2147483647
      %vm1414 = vcmp.lt.s32.totalorder %v1403, %v1413
      %v1415 = vsel %vm1414, %v1403, %v1413
      %vm1416 = vcmp.lt.s32.totalorder %v1406, %v1409
      %v1417 = vsel %vm1416, %v1406, %v1409
      %vm1418 = vcmp.lt.s32.totalorder %v1412, %v1415
      %v1419 = vsel %vm1418, %v1412, %v1415
      %vm1420 = vcmp.lt.s32.totalorder %v1417, %v1419
      %v1421 = vsel %vm1420, %v1417, %v1419
      %v1422 = vrot.slane %v1421, 4
      %vm1423 = vcmp.lt.s32.totalorder %v1421, %v1422
      %v1424 = vsel %vm1423, %v1421, %v1422
      %v1425 = vrot.slane %v1424, 2
      %vm1426 = vcmp.lt.s32.totalorder %v1424, %v1425
      %v1427 = vsel %vm1426, %v1424, %v1425
      %v1428 = vrot.slane %v1427, 1
      %vm1429 = vcmp.lt.s32.totalorder %v1427, %v1428
      %v1430 = vsel %vm1429, %v1427, %v1428
      %vm1431 = vcmp.eq.s32.totalorder %v514, %v1430
      %vm1432 = vcmp.eq.s32.totalorder %v515, %v1430
      %vm1433 = vcmp.eq.s32.totalorder %v516, %v1430
      %vm1434 = vcmp.eq.s32.totalorder %v517, %v1430
      %vm1435 = vcmp.eq.s32.totalorder %v518, %v1430
      %vm1436 = vcmp.eq.s32.totalorder %v519, %v1430
      %vm1437 = vcmp.eq.s32.totalorder %v520, %v1430
      %vm1438 = vcmp.eq.s32.totalorder %v521, %v1430
      %v1439 = vsel %vm1431, -inf, %v1355
      %v1440 = vsel %vm1432, -inf, %v1356
      %v1441 = vsel %vm1433, -inf, %v1357
      %v1442 = vsel %vm1434, -inf, %v1358
      %v1443 = vsel %vm1435, -inf, %v1359
      %v1444 = vsel %vm1436, -inf, %v1360
      %v1445 = vsel %vm1437, -inf, %v1361
      %v1446 = vsel %vm1438, -inf, %v1362
      %v1447 = vsel %vm522, %v1439, -inf
      %v1448 = vsel %vm522, %v1440, -inf
      %v1449 = vsel %vm522, %v1441, -inf
      %v1450 = vsel %vm522, %v1442, -inf
      %v1451 = vsel %vm522, %v1443, -inf
      %v1452 = vmax.f32 %v1447, %v1451
      %v1453 = vsel %vm522, %v1444, -inf
      %v1454 = vmax.f32 %v1448, %v1453
      %v1455 = vsel %vm522, %v1445, -inf
      %v1456 = vmax.f32 %v1449, %v1455
      %v1457 = vsel %vm522, %v1446, -inf
      %v1458 = vmax.f32 %v1450, %v1457
      %v1459 = vmax.f32 %v1452, %v1454
      %v1460 = vmax.f32 %v1456, %v1458
      %v1461 = vmax.f32 %v1459, %v1460
      %v1462 = vrot.slane %v1461, 4
      %v1463 = vmax.f32 %v1461, %v1462
      %v1464 = vrot.slane %v1463, 2
      %v1465 = vmax.f32 %v1463, %v1464
      %v1466 = vrot.slane %v1465, 1
      %v1467 = vmax.f32 %v1465, %v1466
      %vm1468 = vcmp.ge.f32.partialorder %v1439, %v1467
      %vm1469 = vcmp.ge.f32.partialorder %v1440, %v1467
      %vm1470 = vcmp.ge.f32.partialorder %v1441, %v1467
      %vm1471 = vcmp.ge.f32.partialorder %v1442, %v1467
      %vm1472 = vcmp.ge.f32.partialorder %v1443, %v1467
      %vm1473 = vcmp.ge.f32.partialorder %v1444, %v1467
      %vm1474 = vcmp.ge.f32.partialorder %v1445, %v1467
      %vm1475 = vcmp.ge.f32.partialorder %v1446, %v1467
      %v1476 = vsel %vm1468, %v514, 64
      %v1477 = vsel %vm1469, %v515, 64
      %v1478 = vsel %vm1470, %v516, 64
      %v1479 = vsel %vm1471, %v517, 64
      %v1480 = vsel %vm1472, %v518, 64
      %v1481 = vsel %vm1473, %v519, 64
      %v1482 = vsel %vm1474, %v520, 64
      %v1483 = vsel %vm1475, %v521, 64
      %v1484 = vsel %vm522, %v1476, 2147483647
      %v1485 = vsel %vm522, %v1477, 2147483647
      %v1486 = vsel %vm522, %v1478, 2147483647
      %v1487 = vsel %vm522, %v1479, 2147483647
      %v1488 = vsel %vm522, %v1480, 2147483647
      %vm1489 = vcmp.lt.s32.totalorder %v1484, %v1488
      %v1490 = vsel %vm1489, %v1484, %v1488
      %v1491 = vsel %vm522, %v1481, 2147483647
      %vm1492 = vcmp.lt.s32.totalorder %v1485, %v1491
      %v1493 = vsel %vm1492, %v1485, %v1491
      %v1494 = vsel %vm522, %v1482, 2147483647
      %vm1495 = vcmp.lt.s32.totalorder %v1486, %v1494
      %v1496 = vsel %vm1495, %v1486, %v1494
      %v1497 = vsel %vm522, %v1483, 2147483647
      %vm1498 = vcmp.lt.s32.totalorder %v1487, %v1497
      %v1499 = vsel %vm1498, %v1487, %v1497
      %vm1500 = vcmp.lt.s32.totalorder %v1490, %v1493
      %v1501 = vsel %vm1500, %v1490, %v1493
      %vm1502 = vcmp.lt.s32.totalorder %v1496, %v1499
      %v1503 = vsel %vm1502, %v1496, %v1499
      %vm1504 = vcmp.lt.s32.totalorder %v1501, %v1503
      %v1505 = vsel %vm1504, %v1501, %v1503
      %v1506 = vrot.slane %v1505, 4
      %vm1507 = vcmp.lt.s32.totalorder %v1505, %v1506
      %v1508 = vsel %vm1507, %v1505, %v1506
      %v1509 = vrot.slane %v1508, 2
      %vm1510 = vcmp.lt.s32.totalorder %v1508, %v1509
      %v1511 = vsel %vm1510, %v1508, %v1509
      %v1512 = vrot.slane %v1511, 1
      %vm1513 = vcmp.lt.s32.totalorder %v1511, %v1512
      %v1514 = vsel %vm1513, %v1511, %v1512
      %vm1515 = vcmp.eq.s32.totalorder %v514, %v1514
      %vm1516 = vcmp.eq.s32.totalorder %v515, %v1514
      %vm1517 = vcmp.eq.s32.totalorder %v516, %v1514
      %vm1518 = vcmp.eq.s32.totalorder %v517, %v1514
      %vm1519 = vcmp.eq.s32.totalorder %v518, %v1514
      %vm1520 = vcmp.eq.s32.totalorder %v519, %v1514
      %vm1521 = vcmp.eq.s32.totalorder %v520, %v1514
      %vm1522 = vcmp.eq.s32.totalorder %v521, %v1514
      %v1523 = vsel %vm1515, -inf, %v1439
      %v1524 = vsel %vm1516, -inf, %v1440
      %v1525 = vsel %vm1517, -inf, %v1441
      %v1526 = vsel %vm1518, -inf, %v1442
      %v1527 = vsel %vm1519, -inf, %v1443
      %v1528 = vsel %vm1520, -inf, %v1444
      %v1529 = vsel %vm1521, -inf, %v1445
      %v1530 = vsel %vm1522, -inf, %v1446
      %v1531 = vsel %vm522, %v1523, -inf
      %v1532 = vsel %vm522, %v1524, -inf
      %v1533 = vsel %vm522, %v1525, -inf
      %v1534 = vsel %vm522, %v1526, -inf
      %v1535 = vsel %vm522, %v1527, -inf
      %v1536 = vmax.f32 %v1531, %v1535
      %v1537 = vsel %vm522, %v1528, -inf
      %v1538 = vmax.f32 %v1532, %v1537
      %v1539 = vsel %vm522, %v1529, -inf
      %v1540 = vmax.f32 %v1533, %v1539
      %v1541 = vsel %vm522, %v1530, -inf
      %v1542 = vmax.f32 %v1534, %v1541
      %v1543 = vmax.f32 %v1536, %v1538
      %v1544 = vmax.f32 %v1540, %v1542
      %v1545 = vmax.f32 %v1543, %v1544
      %v1546 = vrot.slane %v1545, 4
      %v1547 = vmax.f32 %v1545, %v1546
      %v1548 = vrot.slane %v1547, 2
      %v1549 = vmax.f32 %v1547, %v1548
      %v1550 = vrot.slane %v1549, 1
      %v1551 = vmax.f32 %v1549, %v1550
      %vm1552 = vcmp.ge.f32.partialorder %v1523, %v1551
      %vm1553 = vcmp.ge.f32.partialorder %v1524, %v1551
      %vm1554 = vcmp.ge.f32.partialorder %v1525, %v1551
      %vm1555 = vcmp.ge.f32.partialorder %v1526, %v1551
      %vm1556 = vcmp.ge.f32.partialorder %v1527, %v1551
      %vm1557 = vcmp.ge.f32.partialorder %v1528, %v1551
      %vm1558 = vcmp.ge.f32.partialorder %v1529, %v1551
      %vm1559 = vcmp.ge.f32.partialorder %v1530, %v1551
      %v1560 = vsel %vm1552, %v514, 64
      %v1561 = vsel %vm1553, %v515, 64
      %v1562 = vsel %vm1554, %v516, 64
      %v1563 = vsel %vm1555, %v517, 64
      %v1564 = vsel %vm1556, %v518, 64
      %v1565 = vsel %vm1557, %v519, 64
      %v1566 = vsel %vm1558, %v520, 64
      %v1567 = vsel %vm1559, %v521, 64
      %v1568 = vsel %vm522, %v1560, 2147483647
      %v1569 = vsel %vm522, %v1561, 2147483647
      %v1570 = vsel %vm522, %v1562, 2147483647
      %v1571 = vsel %vm522, %v1563, 2147483647
      %v1572 = vsel %vm522, %v1564, 2147483647
      %vm1573 = vcmp.lt.s32.totalorder %v1568, %v1572
      %v1574 = vsel %vm1573, %v1568, %v1572
      %v1575 = vsel %vm522, %v1565, 2147483647
      %vm1576 = vcmp.lt.s32.totalorder %v1569, %v1575
      %v1577 = vsel %vm1576, %v1569, %v1575
      %v1578 = vsel %vm522, %v1566, 2147483647
      %vm1579 = vcmp.lt.s32.totalorder %v1570, %v1578
      %v1580 = vsel %vm1579, %v1570, %v1578
      %v1581 = vsel %vm522, %v1567, 2147483647
      %vm1582 = vcmp.lt.s32.totalorder %v1571, %v1581
      %v1583 = vsel %vm1582, %v1571, %v1581
      %vm1584 = vcmp.lt.s32.totalorder %v1574, %v1577
      %v1585 = vsel %vm1584, %v1574, %v1577
      %vm1586 = vcmp.lt.s32.totalorder %v1580, %v1583
      %v1587 = vsel %vm1586, %v1580, %v1583
      %vm1588 = vcmp.lt.s32.totalorder %v1585, %v1587
      %v1589 = vsel %vm1588, %v1585, %v1587
      %v1590 = vrot.slane %v1589, 4
      %vm1591 = vcmp.lt.s32.totalorder %v1589, %v1590
      %v1592 = vsel %vm1591, %v1589, %v1590
      %v1593 = vrot.slane %v1592, 2
      %vm1594 = vcmp.lt.s32.totalorder %v1592, %v1593
      %v1595 = vsel %vm1594, %v1592, %v1593
      %v1596 = vrot.slane %v1595, 1
      %vm1597 = vcmp.lt.s32.totalorder %v1595, %v1596
      %v1598 = vsel %vm1597, %v1595, %v1596
      %vm1599 = vcmp.eq.s32.totalorder %v514, %v1598
      %vm1600 = vcmp.eq.s32.totalorder %v515, %v1598
      %vm1601 = vcmp.eq.s32.totalorder %v516, %v1598
      %vm1602 = vcmp.eq.s32.totalorder %v517, %v1598
      %vm1603 = vcmp.eq.s32.totalorder %v518, %v1598
      %vm1604 = vcmp.eq.s32.totalorder %v519, %v1598
      %vm1605 = vcmp.eq.s32.totalorder %v520, %v1598
      %vm1606 = vcmp.eq.s32.totalorder %v521, %v1598
      %v1607 = vsel %vm1599, -inf, %v1523
      %v1608 = vsel %vm1600, -inf, %v1524
      %v1609 = vsel %vm1601, -inf, %v1525
      %v1610 = vsel %vm1602, -inf, %v1526
      %v1611 = vsel %vm1603, -inf, %v1527
      %v1612 = vsel %vm1604, -inf, %v1528
      %v1613 = vsel %vm1605, -inf, %v1529
      %v1614 = vsel %vm1606, -inf, %v1530
      %v1615 = vsel %vm522, %v1607, -inf
      %v1616 = vsel %vm522, %v1608, -inf
      %v1617 = vsel %vm522, %v1609, -inf
      %v1618 = vsel %vm522, %v1610, -inf
      %v1619 = vsel %vm522, %v1611, -inf
      %v1620 = vmax.f32 %v1615, %v1619
      %v1621 = vsel %vm522, %v1612, -inf
      %v1622 = vmax.f32 %v1616, %v1621
      %v1623 = vsel %vm522, %v1613, -inf
      %v1624 = vmax.f32 %v1617, %v1623
      %v1625 = vsel %vm522, %v1614, -inf
      %v1626 = vmax.f32 %v1618, %v1625
      %v1627 = vmax.f32 %v1620, %v1622
      %v1628 = vmax.f32 %v1624, %v1626
      %v1629 = vmax.f32 %v1627, %v1628
      %v1630 = vrot.slane %v1629, 4
      %v1631 = vmax.f32 %v1629, %v1630
      %v1632 = vrot.slane %v1631, 2
      %v1633 = vmax.f32 %v1631, %v1632
      %v1634 = vrot.slane %v1633, 1
      %v1635 = vmax.f32 %v1633, %v1634
      %vm1636 = vcmp.ge.f32.partialorder %v1607, %v1635
      %vm1637 = vcmp.ge.f32.partialorder %v1608, %v1635
      %vm1638 = vcmp.ge.f32.partialorder %v1609, %v1635
      %vm1639 = vcmp.ge.f32.partialorder %v1610, %v1635
      %vm1640 = vcmp.ge.f32.partialorder %v1611, %v1635
      %vm1641 = vcmp.ge.f32.partialorder %v1612, %v1635
      %vm1642 = vcmp.ge.f32.partialorder %v1613, %v1635
      %vm1643 = vcmp.ge.f32.partialorder %v1614, %v1635
      %v1644 = vsel %vm1636, %v514, 64
      %v1645 = vsel %vm1637, %v515, 64
      %v1646 = vsel %vm1638, %v516, 64
      %v1647 = vsel %vm1639, %v517, 64
      %v1648 = vsel %vm1640, %v518, 64
      %v1649 = vsel %vm1641, %v519, 64
      %v1650 = vsel %vm1642, %v520, 64
      %v1651 = vsel %vm1643, %v521, 64
      %v1652 = vsel %vm522, %v1644, 2147483647
      %v1653 = vsel %vm522, %v1645, 2147483647
      %v1654 = vsel %vm522, %v1646, 2147483647
      %v1655 = vsel %vm522, %v1647, 2147483647
      %v1656 = vsel %vm522, %v1648, 2147483647
      %vm1657 = vcmp.lt.s32.totalorder %v1652, %v1656
      %v1658 = vsel %vm1657, %v1652, %v1656
      %v1659 = vsel %vm522, %v1649, 2147483647
      %vm1660 = vcmp.lt.s32.totalorder %v1653, %v1659
      %v1661 = vsel %vm1660, %v1653, %v1659
      %v1662 = vsel %vm522, %v1650, 2147483647
      %vm1663 = vcmp.lt.s32.totalorder %v1654, %v1662
      %v1664 = vsel %vm1663, %v1654, %v1662
      %v1665 = vsel %vm522, %v1651, 2147483647
      %vm1666 = vcmp.lt.s32.totalorder %v1655, %v1665
      %v1667 = vsel %vm1666, %v1655, %v1665
      %vm1668 = vcmp.lt.s32.totalorder %v1658, %v1661
      %v1669 = vsel %vm1668, %v1658, %v1661
      %vm1670 = vcmp.lt.s32.totalorder %v1664, %v1667
      %v1671 = vsel %vm1670, %v1664, %v1667
      %vm1672 = vcmp.lt.s32.totalorder %v1669, %v1671
      %v1673 = vsel %vm1672, %v1669, %v1671
      %v1674 = vrot.slane %v1673, 4
      %vm1675 = vcmp.lt.s32.totalorder %v1673, %v1674
      %v1676 = vsel %vm1675, %v1673, %v1674
      %v1677 = vrot.slane %v1676, 2
      %vm1678 = vcmp.lt.s32.totalorder %v1676, %v1677
      %v1679 = vsel %vm1678, %v1676, %v1677
      %v1680 = vrot.slane %v1679, 1
      %vm1681 = vcmp.lt.s32.totalorder %v1679, %v1680
      %v1682 = vsel %vm1681, %v1679, %v1680
      %vm1683 = vcmp.eq.s32.totalorder %v514, %v1682
      %vm1684 = vcmp.eq.s32.totalorder %v515, %v1682
      %vm1685 = vcmp.eq.s32.totalorder %v516, %v1682
      %vm1686 = vcmp.eq.s32.totalorder %v517, %v1682
      %vm1687 = vcmp.eq.s32.totalorder %v518, %v1682
      %vm1688 = vcmp.eq.s32.totalorder %v519, %v1682
      %vm1689 = vcmp.eq.s32.totalorder %v520, %v1682
      %vm1690 = vcmp.eq.s32.totalorder %v521, %v1682
      %v1691 = vsel %vm1683, -inf, %v1607
      %v1692 = vsel %vm1684, -inf, %v1608
      %v1693 = vsel %vm1685, -inf, %v1609
      %v1694 = vsel %vm1686, -inf, %v1610
      %v1695 = vsel %vm1687, -inf, %v1611
      %v1696 = vsel %vm1688, -inf, %v1612
      %v1697 = vsel %vm1689, -inf, %v1613
      %v1698 = vsel %vm1690, -inf, %v1614
      %v1699 = vsel %vm522, %v1691, -inf
      %v1700 = vsel %vm522, %v1692, -inf
      %v1701 = vsel %vm522, %v1693, -inf
      %v1702 = vsel %vm522, %v1694, -inf
      %v1703 = vsel %vm522, %v1695, -inf
      %v1704 = vmax.f32 %v1699, %v1703
      %v1705 = vsel %vm522, %v1696, -inf
      %v1706 = vmax.f32 %v1700, %v1705
      %v1707 = vsel %vm522, %v1697, -inf
      %v1708 = vmax.f32 %v1701, %v1707
      %v1709 = vsel %vm522, %v1698, -inf
      %v1710 = vmax.f32 %v1702, %v1709
      %v1711 = vmax.f32 %v1704, %v1706
      %v1712 = vmax.f32 %v1708, %v1710
      %v1713 = vmax.f32 %v1711, %v1712
      %v1714 = vrot.slane %v1713, 4
      %v1715 = vmax.f32 %v1713, %v1714
      %v1716 = vrot.slane %v1715, 2
      %v1717 = vmax.f32 %v1715, %v1716
      %v1718 = vrot.slane %v1717, 1
      %v1719 = vmax.f32 %v1717, %v1718
      %vm1720 = vcmp.ge.f32.partialorder %v1691, %v1719
      %vm1721 = vcmp.ge.f32.partialorder %v1692, %v1719
      %vm1722 = vcmp.ge.f32.partialorder %v1693, %v1719
      %vm1723 = vcmp.ge.f32.partialorder %v1694, %v1719
      %vm1724 = vcmp.ge.f32.partialorder %v1695, %v1719
      %vm1725 = vcmp.ge.f32.partialorder %v1696, %v1719
      %vm1726 = vcmp.ge.f32.partialorder %v1697, %v1719
      %vm1727 = vcmp.ge.f32.partialorder %v1698, %v1719
      %v1728 = vsel %vm1720, %v514, 64
      %v1729 = vsel %vm1721, %v515, 64
      %v1730 = vsel %vm1722, %v516, 64
      %v1731 = vsel %vm1723, %v517, 64
      %v1732 = vsel %vm1724, %v518, 64
      %v1733 = vsel %vm1725, %v519, 64
      %v1734 = vsel %vm1726, %v520, 64
      %v1735 = vsel %vm1727, %v521, 64
      %v1736 = vsel %vm522, %v1728, 2147483647
      %v1737 = vsel %vm522, %v1729, 2147483647
      %v1738 = vsel %vm522, %v1730, 2147483647
      %v1739 = vsel %vm522, %v1731, 2147483647
      %v1740 = vsel %vm522, %v1732, 2147483647
      %vm1741 = vcmp.lt.s32.totalorder %v1736, %v1740
      %v1742 = vsel %vm1741, %v1736, %v1740
      %v1743 = vsel %vm522, %v1733, 2147483647
      %vm1744 = vcmp.lt.s32.totalorder %v1737, %v1743
      %v1745 = vsel %vm1744, %v1737, %v1743
      %v1746 = vsel %vm522, %v1734, 2147483647
      %vm1747 = vcmp.lt.s32.totalorder %v1738, %v1746
      %v1748 = vsel %vm1747, %v1738, %v1746
      %v1749 = vsel %vm522, %v1735, 2147483647
      %vm1750 = vcmp.lt.s32.totalorder %v1739, %v1749
      %v1751 = vsel %vm1750, %v1739, %v1749
      %vm1752 = vcmp.lt.s32.totalorder %v1742, %v1745
      %v1753 = vsel %vm1752, %v1742, %v1745
      %vm1754 = vcmp.lt.s32.totalorder %v1748, %v1751
      %v1755 = vsel %vm1754, %v1748, %v1751
      %vm1756 = vcmp.lt.s32.totalorder %v1753, %v1755
      %v1757 = vsel %vm1756, %v1753, %v1755
      %v1758 = vrot.slane %v1757, 4
      %vm1759 = vcmp.lt.s32.totalorder %v1757, %v1758
      %v1760 = vsel %vm1759, %v1757, %v1758
      %v1761 = vrot.slane %v1760, 2
      %vm1762 = vcmp.lt.s32.totalorder %v1760, %v1761
      %v1763 = vsel %vm1762, %v1760, %v1761
      %v1764 = vrot.slane %v1763, 1
      %vm1765 = vcmp.lt.s32.totalorder %v1763, %v1764
      %v1766 = vsel %vm1765, %v1763, %v1764
      %vm1767 = vcmp.eq.s32.totalorder %v514, %v1766
      %vm1768 = vcmp.eq.s32.totalorder %v515, %v1766
      %vm1769 = vcmp.eq.s32.totalorder %v516, %v1766
      %vm1770 = vcmp.eq.s32.totalorder %v517, %v1766
      %vm1771 = vcmp.eq.s32.totalorder %v518, %v1766
      %vm1772 = vcmp.eq.s32.totalorder %v519, %v1766
      %vm1773 = vcmp.eq.s32.totalorder %v520, %v1766
      %vm1774 = vcmp.eq.s32.totalorder %v521, %v1766
      %v1775 = vsel %vm1767, -inf, %v1691
      %v1776 = vsel %vm1768, -inf, %v1692
      %v1777 = vsel %vm1769, -inf, %v1693
      %v1778 = vsel %vm1770, -inf, %v1694
      %v1779 = vsel %vm1771, -inf, %v1695
      %v1780 = vsel %vm1772, -inf, %v1696
      %v1781 = vsel %vm1773, -inf, %v1697
      %v1782 = vsel %vm1774, -inf, %v1698
      %v1783 = vsel %vm522, %v1775, -inf
      %v1784 = vsel %vm522, %v1776, -inf
      %v1785 = vsel %vm522, %v1777, -inf
      %v1786 = vsel %vm522, %v1778, -inf
      %v1787 = vsel %vm522, %v1779, -inf
      %v1788 = vmax.f32 %v1783, %v1787
      %v1789 = vsel %vm522, %v1780, -inf
      %v1790 = vmax.f32 %v1784, %v1789
      %v1791 = vsel %vm522, %v1781, -inf
      %v1792 = vmax.f32 %v1785, %v1791
      %v1793 = vsel %vm522, %v1782, -inf
      %v1794 = vmax.f32 %v1786, %v1793
      %v1795 = vmax.f32 %v1788, %v1790
      %v1796 = vmax.f32 %v1792, %v1794
      %v1797 = vmax.f32 %v1795, %v1796
      %v1798 = vrot.slane %v1797, 4
      %v1799 = vmax.f32 %v1797, %v1798
      %v1800 = vrot.slane %v1799, 2
      %v1801 = vmax.f32 %v1799, %v1800
      %v1802 = vrot.slane %v1801, 1
      %v1803 = vmax.f32 %v1801, %v1802
      %vm1804 = vcmp.ge.f32.partialorder %v1775, %v1803
      %vm1805 = vcmp.ge.f32.partialorder %v1776, %v1803
      %vm1806 = vcmp.ge.f32.partialorder %v1777, %v1803
      %vm1807 = vcmp.ge.f32.partialorder %v1778, %v1803
      %vm1808 = vcmp.ge.f32.partialorder %v1779, %v1803
      %vm1809 = vcmp.ge.f32.partialorder %v1780, %v1803
      %vm1810 = vcmp.ge.f32.partialorder %v1781, %v1803
      %vm1811 = vcmp.ge.f32.partialorder %v1782, %v1803
      %v1812 = vsel %vm1804, %v514, 64
      %v1813 = vsel %vm1805, %v515, 64
      %v1814 = vsel %vm1806, %v516, 64
      %v1815 = vsel %vm1807, %v517, 64
      %v1816 = vsel %vm1808, %v518, 64
      %v1817 = vsel %vm1809, %v519, 64
      %v1818 = vsel %vm1810, %v520, 64
      %v1819 = vsel %vm1811, %v521, 64
      %v1820 = vsel %vm522, %v1812, 2147483647
      %v1821 = vsel %vm522, %v1813, 2147483647
      %v1822 = vsel %vm522, %v1814, 2147483647
      %v1823 = vsel %vm522, %v1815, 2147483647
      %v1824 = vsel %vm522, %v1816, 2147483647
      %vm1825 = vcmp.lt.s32.totalorder %v1820, %v1824
      %v1826 = vsel %vm1825, %v1820, %v1824
      %v1827 = vsel %vm522, %v1817, 2147483647
      %vm1828 = vcmp.lt.s32.totalorder %v1821, %v1827
      %v1829 = vsel %vm1828, %v1821, %v1827
      %v1830 = vsel %vm522, %v1818, 2147483647
      %vm1831 = vcmp.lt.s32.totalorder %v1822, %v1830
      %v1832 = vsel %vm1831, %v1822, %v1830
      %v1833 = vsel %vm522, %v1819, 2147483647
      %vm1834 = vcmp.lt.s32.totalorder %v1823, %v1833
      %v1835 = vsel %vm1834, %v1823, %v1833
      %vm1836 = vcmp.lt.s32.totalorder %v1826, %v1829
      %v1837 = vsel %vm1836, %v1826, %v1829
      %vm1838 = vcmp.lt.s32.totalorder %v1832, %v1835
      %v1839 = vsel %vm1838, %v1832, %v1835
      %vm1840 = vcmp.lt.s32.totalorder %v1837, %v1839
      %v1841 = vsel %vm1840, %v1837, %v1839
      %v1842 = vrot.slane %v1841, 4
      %vm1843 = vcmp.lt.s32.totalorder %v1841, %v1842
      %v1844 = vsel %vm1843, %v1841, %v1842
      %v1845 = vrot.slane %v1844, 2
      %vm1846 = vcmp.lt.s32.totalorder %v1844, %v1845
      %v1847 = vsel %vm1846, %v1844, %v1845
      %v1848 = vrot.slane %v1847, 1
      %vm1849 = vcmp.lt.s32.totalorder %v1847, %v1848
      %v1850 = vsel %vm1849, %v1847, %v1848
      %vm1851 = vcmp.eq.s32.totalorder %v514, %v1850
      %vm1852 = vcmp.eq.s32.totalorder %v515, %v1850
      %vm1853 = vcmp.eq.s32.totalorder %v516, %v1850
      %vm1854 = vcmp.eq.s32.totalorder %v517, %v1850
      %vm1855 = vcmp.eq.s32.totalorder %v518, %v1850
      %vm1856 = vcmp.eq.s32.totalorder %v519, %v1850
      %vm1857 = vcmp.eq.s32.totalorder %v520, %v1850
      %vm1858 = vcmp.eq.s32.totalorder %v521, %v1850
      %v1859 = vsel %vm1851, -inf, %v1775
      %v1860 = vsel %vm1852, -inf, %v1776
      %v1861 = vsel %vm1853, -inf, %v1777
      %v1862 = vsel %vm1854, -inf, %v1778
      %v1863 = vsel %vm1855, -inf, %v1779
      %v1864 = vsel %vm1856, -inf, %v1780
      %v1865 = vsel %vm1857, -inf, %v1781
      %v1866 = vsel %vm1858, -inf, %v1782
      %v1867 = vsel %vm522, %v1859, -inf
      %v1868 = vsel %vm522, %v1860, -inf
      %v1869 = vsel %vm522, %v1861, -inf
      %v1870 = vsel %vm522, %v1862, -inf
      %v1871 = vsel %vm522, %v1863, -inf
      %v1872 = vmax.f32 %v1867, %v1871
      %v1873 = vsel %vm522, %v1864, -inf
      %v1874 = vmax.f32 %v1868, %v1873
      %v1875 = vsel %vm522, %v1865, -inf
      %v1876 = vmax.f32 %v1869, %v1875
      %v1877 = vsel %vm522, %v1866, -inf
      %v1878 = vmax.f32 %v1870, %v1877
      %v1879 = vmax.f32 %v1872, %v1874
      %v1880 = vmax.f32 %v1876, %v1878
      %v1881 = vmax.f32 %v1879, %v1880
      %v1882 = vrot.slane %v1881, 4
      %v1883 = vmax.f32 %v1881, %v1882
      %v1884 = vrot.slane %v1883, 2
      %v1885 = vmax.f32 %v1883, %v1884
      %v1886 = vrot.slane %v1885, 1
      %v1887 = vmax.f32 %v1885, %v1886
      %vm1888 = vcmp.ge.f32.partialorder %v1859, %v1887
      %vm1889 = vcmp.ge.f32.partialorder %v1860, %v1887
      %vm1890 = vcmp.ge.f32.partialorder %v1861, %v1887
      %vm1891 = vcmp.ge.f32.partialorder %v1862, %v1887
      %vm1892 = vcmp.ge.f32.partialorder %v1863, %v1887
      %vm1893 = vcmp.ge.f32.partialorder %v1864, %v1887
      %vm1894 = vcmp.ge.f32.partialorder %v1865, %v1887
      %vm1895 = vcmp.ge.f32.partialorder %v1866, %v1887
      %v1896 = vsel %vm1888, %v514, 64
      %v1897 = vsel %vm1889, %v515, 64
      %v1898 = vsel %vm1890, %v516, 64
      %v1899 = vsel %vm1891, %v517, 64
      %v1900 = vsel %vm1892, %v518, 64
      %v1901 = vsel %vm1893, %v519, 64
      %v1902 = vsel %vm1894, %v520, 64
      %v1903 = vsel %vm1895, %v521, 64
      %v1904 = vsel %vm522, %v1896, 2147483647
      %v1905 = vsel %vm522, %v1897, 2147483647
      %v1906 = vsel %vm522, %v1898, 2147483647
      %v1907 = vsel %vm522, %v1899, 2147483647
      %v1908 = vsel %vm522, %v1900, 2147483647
      %vm1909 = vcmp.lt.s32.totalorder %v1904, %v1908
      %v1910 = vsel %vm1909, %v1904, %v1908
      %v1911 = vsel %vm522, %v1901, 2147483647
      %vm1912 = vcmp.lt.s32.totalorder %v1905, %v1911
      %v1913 = vsel %vm1912, %v1905, %v1911
      %v1914 = vsel %vm522, %v1902, 2147483647
      %vm1915 = vcmp.lt.s32.totalorder %v1906, %v1914
      %v1916 = vsel %vm1915, %v1906, %v1914
      %v1917 = vsel %vm522, %v1903, 2147483647
      %vm1918 = vcmp.lt.s32.totalorder %v1907, %v1917
      %v1919 = vsel %vm1918, %v1907, %v1917
      %vm1920 = vcmp.lt.s32.totalorder %v1910, %v1913
      %v1921 = vsel %vm1920, %v1910, %v1913
      %vm1922 = vcmp.lt.s32.totalorder %v1916, %v1919
      %v1923 = vsel %vm1922, %v1916, %v1919
      %vm1924 = vcmp.lt.s32.totalorder %v1921, %v1923
      %v1925 = vsel %vm1924, %v1921, %v1923
      %v1926 = vrot.slane %v1925, 4
      %vm1927 = vcmp.lt.s32.totalorder %v1925, %v1926
      %v1928 = vsel %vm1927, %v1925, %v1926
      %v1929 = vrot.slane %v1928, 2
      %vm1930 = vcmp.lt.s32.totalorder %v1928, %v1929
      %v1931 = vsel %vm1930, %v1928, %v1929
      %v1932 = vrot.slane %v1931, 1
      %vm1933 = vcmp.lt.s32.totalorder %v1931, %v1932
      %v1934 = vsel %vm1933, %v1931, %v1932
      %vm1935 = vcmp.eq.s32.totalorder %v514, %v1934
      %vm1936 = vcmp.eq.s32.totalorder %v515, %v1934
      %vm1937 = vcmp.eq.s32.totalorder %v516, %v1934
      %vm1938 = vcmp.eq.s32.totalorder %v517, %v1934
      %vm1939 = vcmp.eq.s32.totalorder %v518, %v1934
      %vm1940 = vcmp.eq.s32.totalorder %v519, %v1934
      %vm1941 = vcmp.eq.s32.totalorder %v520, %v1934
      %vm1942 = vcmp.eq.s32.totalorder %v521, %v1934
      %v1943 = vsel %vm1935, -inf, %v1859
      %v1944 = vsel %vm1936, -inf, %v1860
      %v1945 = vsel %vm1937, -inf, %v1861
      %v1946 = vsel %vm1938, -inf, %v1862
      %v1947 = vsel %vm1939, -inf, %v1863
      %v1948 = vsel %vm1940, -inf, %v1864
      %v1949 = vsel %vm1941, -inf, %v1865
      %v1950 = vsel %vm1942, -inf, %v1866
      %v1951 = vsel %vm522, %v1943, -inf
      %v1952 = vsel %vm522, %v1944, -inf
      %v1953 = vsel %vm522, %v1945, -inf
      %v1954 = vsel %vm522, %v1946, -inf
      %v1955 = vsel %vm522, %v1947, -inf
      %v1956 = vmax.f32 %v1951, %v1955
      %v1957 = vsel %vm522, %v1948, -inf
      %v1958 = vmax.f32 %v1952, %v1957
      %v1959 = vsel %vm522, %v1949, -inf
      %v1960 = vmax.f32 %v1953, %v1959
      %v1961 = vsel %vm522, %v1950, -inf
      %v1962 = vmax.f32 %v1954, %v1961
      %v1963 = vmax.f32 %v1956, %v1958
      %v1964 = vmax.f32 %v1960, %v1962
      %v1965 = vmax.f32 %v1963, %v1964
      %v1966 = vrot.slane %v1965, 4
      %v1967 = vmax.f32 %v1965, %v1966
      %v1968 = vrot.slane %v1967, 2
      %v1969 = vmax.f32 %v1967, %v1968
      %v1970 = vrot.slane %v1969, 1
      %v1971 = vmax.f32 %v1969, %v1970
      %vm1972 = vcmp.ge.f32.partialorder %v1943, %v1971
      %vm1973 = vcmp.ge.f32.partialorder %v1944, %v1971
      %vm1974 = vcmp.ge.f32.partialorder %v1945, %v1971
      %vm1975 = vcmp.ge.f32.partialorder %v1946, %v1971
      %vm1976 = vcmp.ge.f32.partialorder %v1947, %v1971
      %vm1977 = vcmp.ge.f32.partialorder %v1948, %v1971
      %vm1978 = vcmp.ge.f32.partialorder %v1949, %v1971
      %vm1979 = vcmp.ge.f32.partialorder %v1950, %v1971
      %v1980 = vsel %vm1972, %v514, 64
      %v1981 = vsel %vm1973, %v515, 64
      %v1982 = vsel %vm1974, %v516, 64
      %v1983 = vsel %vm1975, %v517, 64
      %v1984 = vsel %vm1976, %v518, 64
      %v1985 = vsel %vm1977, %v519, 64
      %v1986 = vsel %vm1978, %v520, 64
      %v1987 = vsel %vm1979, %v521, 64
      %v1988 = vsel %vm522, %v1980, 2147483647
      %v1989 = vsel %vm522, %v1981, 2147483647
      %v1990 = vsel %vm522, %v1982, 2147483647
      %v1991 = vsel %vm522, %v1983, 2147483647
      %v1992 = vsel %vm522, %v1984, 2147483647
      %vm1993 = vcmp.lt.s32.totalorder %v1988, %v1992
      %v1994 = vsel %vm1993, %v1988, %v1992
      %v1995 = vsel %vm522, %v1985, 2147483647
      %vm1996 = vcmp.lt.s32.totalorder %v1989, %v1995
      %v1997 = vsel %vm1996, %v1989, %v1995
      %v1998 = vsel %vm522, %v1986, 2147483647
      %vm1999 = vcmp.lt.s32.totalorder %v1990, %v1998
      %v2000 = vsel %vm1999, %v1990, %v1998
      %v2001 = vsel %vm522, %v1987, 2147483647
      %vm2002 = vcmp.lt.s32.totalorder %v1991, %v2001
      %v2003 = vsel %vm2002, %v1991, %v2001
      %vm2004 = vcmp.lt.s32.totalorder %v1994, %v1997
      %v2005 = vsel %vm2004, %v1994, %v1997
      %vm2006 = vcmp.lt.s32.totalorder %v2000, %v2003
      %v2007 = vsel %vm2006, %v2000, %v2003
      %vm2008 = vcmp.lt.s32.totalorder %v2005, %v2007
      %v2009 = vsel %vm2008, %v2005, %v2007
      %v2010 = vrot.slane %v2009, 4
      %vm2011 = vcmp.lt.s32.totalorder %v2009, %v2010
      %v2012 = vsel %vm2011, %v2009, %v2010
      %v2013 = vrot.slane %v2012, 2
      %vm2014 = vcmp.lt.s32.totalorder %v2012, %v2013
      %v2015 = vsel %vm2014, %v2012, %v2013
      %v2016 = vrot.slane %v2015, 1
      %vm2017 = vcmp.lt.s32.totalorder %v2015, %v2016
      %v2018 = vsel %vm2017, %v2015, %v2016
      %vm2019 = vcmp.eq.s32.totalorder %v514, %v2018
      %vm2020 = vcmp.eq.s32.totalorder %v515, %v2018
      %vm2021 = vcmp.eq.s32.totalorder %v516, %v2018
      %vm2022 = vcmp.eq.s32.totalorder %v517, %v2018
      %vm2023 = vcmp.eq.s32.totalorder %v518, %v2018
      %vm2024 = vcmp.eq.s32.totalorder %v519, %v2018
      %vm2025 = vcmp.eq.s32.totalorder %v520, %v2018
      %vm2026 = vcmp.eq.s32.totalorder %v521, %v2018
      %v2027 = vsel %vm2019, -inf, %v1943
      %v2028 = vsel %vm2020, -inf, %v1944
      %v2029 = vsel %vm2021, -inf, %v1945
      %v2030 = vsel %vm2022, -inf, %v1946
      %v2031 = vsel %vm2023, -inf, %v1947
      %v2032 = vsel %vm2024, -inf, %v1948
      %v2033 = vsel %vm2025, -inf, %v1949
      %v2034 = vsel %vm2026, -inf, %v1950
      %v2035 = vsel %vm522, %v2027, -inf
      %v2036 = vsel %vm522, %v2028, -inf
      %v2037 = vsel %vm522, %v2029, -inf
      %v2038 = vsel %vm522, %v2030, -inf
      %v2039 = vsel %vm522, %v2031, -inf
      %v2040 = vmax.f32 %v2035, %v2039
      %v2041 = vsel %vm522, %v2032, -inf
      %v2042 = vmax.f32 %v2036, %v2041
      %v2043 = vsel %vm522, %v2033, -inf
      %v2044 = vmax.f32 %v2037, %v2043
      %v2045 = vsel %vm522, %v2034, -inf
      %v2046 = vmax.f32 %v2038, %v2045
      %v2047 = vmax.f32 %v2040, %v2042
      %v2048 = vmax.f32 %v2044, %v2046
      %v2049 = vmax.f32 %v2047, %v2048
      %v2050 = vrot.slane %v2049, 4
      %v2051 = vmax.f32 %v2049, %v2050
      %v2052 = vrot.slane %v2051, 2
      %v2053 = vmax.f32 %v2051, %v2052
      %v2054 = vrot.slane %v2053, 1
      %v2055 = vmax.f32 %v2053, %v2054
      %vm2056 = vcmp.ge.f32.partialorder %v2027, %v2055
      %vm2057 = vcmp.ge.f32.partialorder %v2028, %v2055
      %vm2058 = vcmp.ge.f32.partialorder %v2029, %v2055
      %vm2059 = vcmp.ge.f32.partialorder %v2030, %v2055
      %vm2060 = vcmp.ge.f32.partialorder %v2031, %v2055
      %vm2061 = vcmp.ge.f32.partialorder %v2032, %v2055
      %vm2062 = vcmp.ge.f32.partialorder %v2033, %v2055
      %vm2063 = vcmp.ge.f32.partialorder %v2034, %v2055
      %v2064 = vsel %vm2056, %v514, 64
      %v2065 = vsel %vm2057, %v515, 64
      %v2066 = vsel %vm2058, %v516, 64
      %v2067 = vsel %vm2059, %v517, 64
      %v2068 = vsel %vm2060, %v518, 64
      %v2069 = vsel %vm2061, %v519, 64
      %v2070 = vsel %vm2062, %v520, 64
      %v2071 = vsel %vm2063, %v521, 64
      %v2072 = vsel %vm522, %v2064, 2147483647
      %v2073 = vsel %vm522, %v2065, 2147483647
      %v2074 = vsel %vm522, %v2066, 2147483647
      %v2075 = vsel %vm522, %v2067, 2147483647
      %v2076 = vsel %vm522, %v2068, 2147483647
      %vm2077 = vcmp.lt.s32.totalorder %v2072, %v2076
      %v2078 = vsel %vm2077, %v2072, %v2076
      %v2079 = vsel %vm522, %v2069, 2147483647
      %vm2080 = vcmp.lt.s32.totalorder %v2073, %v2079
      %v2081 = vsel %vm2080, %v2073, %v2079
      %v2082 = vsel %vm522, %v2070, 2147483647
      %vm2083 = vcmp.lt.s32.totalorder %v2074, %v2082
      %v2084 = vsel %vm2083, %v2074, %v2082
      %v2085 = vsel %vm522, %v2071, 2147483647
      %vm2086 = vcmp.lt.s32.totalorder %v2075, %v2085
      %v2087 = vsel %vm2086, %v2075, %v2085
      %vm2088 = vcmp.lt.s32.totalorder %v2078, %v2081
      %v2089 = vsel %vm2088, %v2078, %v2081
      %vm2090 = vcmp.lt.s32.totalorder %v2084, %v2087
      %v2091 = vsel %vm2090, %v2084, %v2087
      %vm2092 = vcmp.lt.s32.totalorder %v2089, %v2091
      %v2093 = vsel %vm2092, %v2089, %v2091
      %v2094 = vrot.slane %v2093, 4
      %vm2095 = vcmp.lt.s32.totalorder %v2093, %v2094
      %v2096 = vsel %vm2095, %v2093, %v2094
      %v2097 = vrot.slane %v2096, 2
      %vm2098 = vcmp.lt.s32.totalorder %v2096, %v2097
      %v2099 = vsel %vm2098, %v2096, %v2097
      %v2100 = vrot.slane %v2099, 1
      %vm2101 = vcmp.lt.s32.totalorder %v2099, %v2100
      %v2102 = vsel %vm2101, %v2099, %v2100
      %vm2103 = vcmp.eq.s32.totalorder %v514, %v2102
      %vm2104 = vcmp.eq.s32.totalorder %v515, %v2102
      %vm2105 = vcmp.eq.s32.totalorder %v516, %v2102
      %vm2106 = vcmp.eq.s32.totalorder %v517, %v2102
      %vm2107 = vcmp.eq.s32.totalorder %v518, %v2102
      %vm2108 = vcmp.eq.s32.totalorder %v519, %v2102
      %vm2109 = vcmp.eq.s32.totalorder %v520, %v2102
      %vm2110 = vcmp.eq.s32.totalorder %v521, %v2102
      %v2111 = vsel %vm2103, -inf, %v2027
      %v2112 = vsel %vm2104, -inf, %v2028
      %v2113 = vsel %vm2105, -inf, %v2029
      %v2114 = vsel %vm2106, -inf, %v2030
      %v2115 = vsel %vm2107, -inf, %v2031
      %v2116 = vsel %vm2108, -inf, %v2032
      %v2117 = vsel %vm2109, -inf, %v2033
      %v2118 = vsel %vm2110, -inf, %v2034
      %v2119 = vsel %vm522, %v2111, -inf
      %v2120 = vsel %vm522, %v2112, -inf
      %v2121 = vsel %vm522, %v2113, -inf
      %v2122 = vsel %vm522, %v2114, -inf
      %v2123 = vsel %vm522, %v2115, -inf
      %v2124 = vmax.f32 %v2119, %v2123
      %v2125 = vsel %vm522, %v2116, -inf
      %v2126 = vmax.f32 %v2120, %v2125
      %v2127 = vsel %vm522, %v2117, -inf
      %v2128 = vmax.f32 %v2121, %v2127
      %v2129 = vsel %vm522, %v2118, -inf
      %v2130 = vmax.f32 %v2122, %v2129
      %v2131 = vmax.f32 %v2124, %v2126
      %v2132 = vmax.f32 %v2128, %v2130
      %v2133 = vmax.f32 %v2131, %v2132
      %v2134 = vrot.slane %v2133, 4
      %v2135 = vmax.f32 %v2133, %v2134
      %v2136 = vrot.slane %v2135, 2
      %v2137 = vmax.f32 %v2135, %v2136
      %v2138 = vrot.slane %v2137, 1
      %v2139 = vmax.f32 %v2137, %v2138
      %vm2140 = vcmp.ge.f32.partialorder %v2111, %v2139
      %vm2141 = vcmp.ge.f32.partialorder %v2112, %v2139
      %vm2142 = vcmp.ge.f32.partialorder %v2113, %v2139
      %vm2143 = vcmp.ge.f32.partialorder %v2114, %v2139
      %vm2144 = vcmp.ge.f32.partialorder %v2115, %v2139
      %vm2145 = vcmp.ge.f32.partialorder %v2116, %v2139
      %vm2146 = vcmp.ge.f32.partialorder %v2117, %v2139
      %vm2147 = vcmp.ge.f32.partialorder %v2118, %v2139
      %v2148 = vsel %vm2140, %v514, 64
      %v2149 = vsel %vm2141, %v515, 64
      %v2150 = vsel %vm2142, %v516, 64
      %v2151 = vsel %vm2143, %v517, 64
      %v2152 = vsel %vm2144, %v518, 64
      %v2153 = vsel %vm2145, %v519, 64
      %v2154 = vsel %vm2146, %v520, 64
      %v2155 = vsel %vm2147, %v521, 64
      %v2156 = vsel %vm522, %v2148, 2147483647
      %v2157 = vsel %vm522, %v2149, 2147483647
      %v2158 = vsel %vm522, %v2150, 2147483647
      %v2159 = vsel %vm522, %v2151, 2147483647
      %v2160 = vsel %vm522, %v2152, 2147483647
      %vm2161 = vcmp.lt.s32.totalorder %v2156, %v2160
      %v2162 = vsel %vm2161, %v2156, %v2160
      %v2163 = vsel %vm522, %v2153, 2147483647
      %vm2164 = vcmp.lt.s32.totalorder %v2157, %v2163
      %v2165 = vsel %vm2164, %v2157, %v2163
      %v2166 = vsel %vm522, %v2154, 2147483647
      %vm2167 = vcmp.lt.s32.totalorder %v2158, %v2166
      %v2168 = vsel %vm2167, %v2158, %v2166
      %v2169 = vsel %vm522, %v2155, 2147483647
      %vm2170 = vcmp.lt.s32.totalorder %v2159, %v2169
      %v2171 = vsel %vm2170, %v2159, %v2169
      %vm2172 = vcmp.lt.s32.totalorder %v2162, %v2165
      %v2173 = vsel %vm2172, %v2162, %v2165
      %vm2174 = vcmp.lt.s32.totalorder %v2168, %v2171
      %v2175 = vsel %vm2174, %v2168, %v2171
      %vm2176 = vcmp.lt.s32.totalorder %v2173, %v2175
      %v2177 = vsel %vm2176, %v2173, %v2175
      %v2178 = vrot.slane %v2177, 4
      %vm2179 = vcmp.lt.s32.totalorder %v2177, %v2178
      %v2180 = vsel %vm2179, %v2177, %v2178
      %v2181 = vrot.slane %v2180, 2
      %vm2182 = vcmp.lt.s32.totalorder %v2180, %v2181
      %v2183 = vsel %vm2182, %v2180, %v2181
      %v2184 = vrot.slane %v2183, 1
      %vm2185 = vcmp.lt.s32.totalorder %v2183, %v2184
      %v2186 = vsel %vm2185, %v2183, %v2184
      %vm2187 = vcmask 1040384
      %v2188 = vsel %vm2187, %v590, %v674
      %vm2189 = vcmask 1041408
      %v2190 = vsel %vm2189, %v2188, %v758
      %v2191 = vsel %vm325, %v2190, %v842
      %vm2192 = vcmask 1043456
      %v2193 = vsel %vm2192, %v2191, %v926
      %vm2194 = vcmask 1044480
      %v2195 = vsel %vm2194, %v2193, %v1010
      %vm2196 = vcmask 1045504
      %v2197 = vsel %vm2196, %v2195, %v1094
      %vm2198 = vcmask 1046528
      %v2199 = vsel %vm2198, %v2197, %v1178
      %v2200 = vsel %vm2187, %v1262, %v1346
      %v2201 = vsel %vm2189, %v2200, %v1430
      %v2202 = vsel %vm325, %v2201, %v1514
      %v2203 = vsel %vm2192, %v2202, %v1598
      %v2204 = vsel %vm2194, %v2203, %v1682
      %v2205 = vsel %vm2196, %v2204, %v1766
      %v2206 = vsel %vm2198, %v2205, %v1850
      %v2207 = vsel %vm2187, %v1934, %v2018
      %v2208 = vsel %vm2189, %v2207, %v2102
      %v2209 = vsel %vm325, %v2208, %v2186
      %2210 = vst.msk [vmem:[%s290] sm:$0xff] %vm522, %v2199
      %2211 = vst.msk [vmem:[%s290 + $0x8] sm:$0xff] %vm522, %v2206
      %vm2212 = vcmask 519168
      %2213 = vst.msk [vmem:[%s290 + $0x10] sm:$0xf] %vm2212, %v2209
      %p2214 = scmp.lt.s32.totalorder %s19, 1
      %s2215 = scalar_select %p2214, %s19, 1
      %p2216 = scmp.lt.s32.totalorder %s20, 0
      %s2217 = scalar_select %p2216, %s20, 0
      %s2218 = smul.addr %s2215, 3
      %s2219 = sadd.s32 %s2217, %s2218
      %s2220 = smul.addr %s2219, 8
      %s2221 = scalar_lea.vmem %s4, %s2220
      // Predicated region
      $region37: #{tpu_custom_call.1} parent=35 // pred_check
        %p2222 = pneg %p155
      $region38: #{tpu_custom_call.1} parent=35 // pred_check_branch
        %2224 = sbr.rel (%p2222) target = $region40
      $region39: #{tpu_custom_call.1} parent=35 // pred_region
        _
      $region40: #{tpu_custom_call.1} parent=35 // pred_fallthru
        _
    $region36: #{tpu_custom_call.1} parent=5 // pred_fallthru
      _
    %p2225 = scmp.le.s32.totalorder 2, %s10
    // Predicated region
    $region41: #{tpu_custom_call.1} parent=5 // pred_check
      %p2226 = pneg %p2225
    $region42: #{tpu_custom_call.1} parent=5 // pred_check_branch
      %2228 = sbr.rel (%p2226) target = $region44
    $region43: #{tpu_custom_call.1} parent=5 // pred_region
      %s2229 = ssub.s32 %s10, 2
      // Predicated region
      $region45: #{tpu_custom_call.1} parent=43 // pred_check
        %p2230 = pneg %p161
      $region46: #{tpu_custom_call.1} parent=43 // pred_check_branch
        %2232 = sbr.rel (%p2230) target = $region48
      $region47: #{tpu_custom_call.1} parent=43 // pred_region
        %p2233 = scmp.lt.s32.totalorder %s21, 1
        %s2234 = scalar_select %p2233, %s21, 1
        %p2235 = scmp.lt.s32.totalorder %s22, 0
        %s2236 = scalar_select %p2235, %s22, 0
        %s2237 = smul.addr %s2234, 3
        %s2238 = sadd.s32 %s2236, %s2237
        %s2239 = smul.addr %s2238, 8
        %s2240 = scalar_lea.vmem %s4, %s2239
      $region48: #{tpu_custom_call.1} parent=43 // pred_fallthru
        _
    $region44: #{tpu_custom_call.1} parent=5 // pred_fallthru
      _
  $region6: #{tpu_custom_call.1} parent=0 // loop_footer
    %s14 = sadd.s32 1, %s10
  $region7: #{tpu_custom_call.1} parent=0 // loop_footer_branch
    %9 = sbr.rel target = $region3
  $region8: #{tpu_custom_call.1} parent=0 // loop_exit
    _

</llo_original>
